<compile_context>
chip_gen: v7x
topology: tpu7x:2x2x1
jax: 0.10.0
libtpu: 0.0.40
codegen_flags: <defaults>
</compile_context>

<pallas_src>
import functools

import jax
import jax.numpy as jnp
from jax.experimental import pallas as pl
from jax.experimental.pallas import tpu as pltpu

_LANE = 128


def _round_up(v, m):
    return ((v + m - 1) // m) * m


def _pad2d(arr, rows, cols):
    r, c = arr.shape
    if r == rows and c == cols:
        return arr
    return jnp.pad(arr, ((0, rows - r), (0, cols - c)))


def _vmem_cap_bytes():
    """Generation-aware VMEM budget with headroom (safe 48 MiB fallback)."""
    try:
        phys = int(pltpu.get_tpu_info().vmem_capacity_bytes)
        # ~48-56 MiB on v7x (64 MiB physical), ~100 MiB on v5e/v6e (128 MiB physical)
        return max(32 << 20, min(int(phys * 0.78), phys - (16 << 20)))
    except Exception:
        return 48 << 20


# ---------------------------------------------------------------------------
# Normalized adjacency (PyG gcn_norm / add_remaining_self_loops semantics)
# ---------------------------------------------------------------------------
def build_normalized_adjacency(edge_index, num_nodes):
    src, dst = edge_index[0], edge_index[1]
    # add_remaining_self_loops: drop existing self-loops, add exactly one
    # unit-weight self-loop per node (pre-existing loops keep weight 1).
    w = (src != dst).astype(jnp.float32)
    a = jnp.zeros((num_nodes, num_nodes), jnp.float32).at[dst, src].add(w)
    a = a + jnp.eye(num_nodes, dtype=jnp.float32)
    deg = a.sum(axis=1)                       # in-degree incl. self-loop (>= 1)
    dinv = jax.lax.rsqrt(deg)
    return (dinv[:, None] * a) * dinv[None, :]


def build_normalized_adjacency_padded_bf16(edge_index, num_nodes, padded_nodes):
    """Padded bf16 A_hat built directly (cast before pad -> minimal HBM prologue)."""
    a_bf16 = build_normalized_adjacency(edge_index, num_nodes).astype(jnp.bfloat16)
    if padded_nodes == num_nodes:
        return a_bf16
    return jnp.zeros((padded_nodes, padded_nodes), jnp.bfloat16).at[
        :num_nodes, :num_nodes].set(a_bf16)


# ---------------------------------------------------------------------------
# FUSED kernel: whole 4-layer forward in one pallas_call, A_hat read once.
#   a_ref : (Np, Np) bf16   x_ref : (Np, Fin) bf16
#   wX    : bf16 padded weights,  bX : f32 padded biases (1, Fo)
#   enc_ref : (Np, Femb) f32,  rec_ref : (Np, Fin) f32
# ---------------------------------------------------------------------------
def gcn_fused_kernel(a_ref, x_ref,
                     w1_ref, b1_ref, w2_ref, b2_ref,
                     w3_ref, b3_ref, w4_ref, b4_ref,
                     enc_ref, rec_ref):
    a = a_ref[...]                            # bf16, reused by all four layers

    def layer(h_bf16, w_ref, b_ref, relu):
        # tiny (Np, Fi) @ (Fi, Fo), bf16 MXU in / f32 accumulate
        hw = jnp.dot(h_bf16, w_ref[...],
                     preferred_element_type=jnp.float32).astype(jnp.bfloat16)
        out = jnp.dot(a, hw, preferred_element_type=jnp.float32) + b_ref[...]
        if relu:
            out = jnp.maximum(out, 0.0)
        return out

    h1 = layer(x_ref[...], w1_ref, b1_ref, True).astype(jnp.bfloat16)
    enc = layer(h1, w2_ref, b2_ref, True)
    enc_ref[...] = enc.astype(enc_ref.dtype)
    h3 = layer(enc.astype(jnp.bfloat16), w3_ref, b3_ref, True).astype(jnp.bfloat16)
    rec = layer(h3, w4_ref, b4_ref, False)
    rec_ref[...] = rec.astype(rec_ref.dtype)


def _gcn_fused(a_bf16, x_bf16, weights_bf16, biases_f32, f_emb, f_in, vmem_cap):
    np_ = a_bf16.shape[0]
    w1, w2, w3, w4 = weights_bf16
    b1, b2, b3, b4 = biases_f32

    def full(shape):
        return pl.BlockSpec(shape, lambda i: (0, 0))

    return pl.pallas_call(
        gcn_fused_kernel,
        out_shape=(jax.ShapeDtypeStruct((np_, f_emb), jnp.float32),
                   jax.ShapeDtypeStruct((np_, f_in), jnp.float32)),
        grid_spec=pltpu.PrefetchScalarGridSpec(
            num_scalar_prefetch=0,
            grid=(1,),
            in_specs=[
                full(a_bf16.shape), full(x_bf16.shape),
                full(w1.shape), full(b1.shape),
                full(w2.shape), full(b2.shape),
                full(w3.shape), full(b3.shape),
                full(w4.shape), full(b4.shape),
            ],
            out_specs=[full((np_, f_emb)), full((np_, f_in))],
        ),
        compiler_params=pltpu.CompilerParams(
            dimension_semantics=("arbitrary",),
            vmem_limit_bytes=vmem_cap,
        ),
    )(a_bf16, x_bf16, w1, b1, w2, b2, w3, b3, w4, b4)


# ---------------------------------------------------------------------------
# TILED kernel: one row-block of one layer; HW = H @ W precomputed (wrapper/XLA).
#   a_ref  : (tm, Np) bf16   A_hat row-block (streamed from HBM)
#   hw_ref : (Np, Fo) bf16   H @ W, VMEM-resident across the row grid
#   b_ref  : (1,  Fo) f32
#   o_ref  : (tm, Fo)
# ---------------------------------------------------------------------------
def gcn_rowblock_kernel(a_ref, hw_ref, b_ref, o_ref, *, apply_relu):
    out = jnp.dot(a_ref[...], hw_ref[...],
                  preferred_element_type=jnp.float32) + b_ref[...]
    if apply_relu:
        out = jnp.maximum(out, 0.0)
    o_ref[...] = out.astype(o_ref.dtype)


def _tiled_vmem_budget(tm, np_, fo, out_itemsize, vmem_cap):
    need = 0
    need += 2 * tm * np_ * 2            # A row-block, bf16, double-buffered
    need += 2 * np_ * fo * 2            # resident HW bf16 (counted x2 conservatively)
    need += 2 * 8 * fo * 4              # bias tile (sublane-padded to 8 rows)
    need += 2 * tm * fo * out_itemsize  # output row-block, double-buffered
    return min(need + (4 << 20), vmem_cap)


def _gcn_layer_tiled(a_bf16, hw_bf16, b, *, relu, out_dtype, tm, vmem_cap):
    np_ = a_bf16.shape[0]
    fo = hw_bf16.shape[1]
    kernel = functools.partial(gcn_rowblock_kernel, apply_relu=relu)
    return pl.pallas_call(
        kernel,
        out_shape=jax.ShapeDtypeStruct((np_, fo), out_dtype),
        grid_spec=pltpu.PrefetchScalarGridSpec(
            num_scalar_prefetch=0,
            grid=(np_ // tm,),
            in_specs=[
                pl.BlockSpec((tm, np_), lambda i: (i, 0)),   # A_hat row-block
                pl.BlockSpec((np_, fo), lambda i: (0, 0)),   # HW (resident)
                pl.BlockSpec((1, fo), lambda i: (0, 0)),     # bias (resident)
            ],
            out_specs=pl.BlockSpec((tm, fo), lambda i: (i, 0)),
        ),
        compiler_params=pltpu.CompilerParams(
            dimension_semantics=("parallel",),
            vmem_limit_bytes=_tiled_vmem_budget(
                tm, np_, fo, jnp.dtype(out_dtype).itemsize, vmem_cap),
        ),
    )(a_bf16, hw_bf16, b)


# ---------------------------------------------------------------------------
# Forward pass
# ---------------------------------------------------------------------------
def gcn_autoencoder_forward(x, edge_index, params, *, block_rows=512):
    n, input_dim = x.shape
    (w1, b1), (w2, b2), (w3, b3), (w4, b4) = params
    hidden_dim = w1.shape[1]
    embedding_dim = w2.shape[1]

    f_in = _round_up(input_dim, _LANE)
    f_hid = _round_up(hidden_dim, _LANE)
    f_emb = _round_up(embedding_dim, _LANE)

    # Lane-padded weights / biases (weights feed the MXU in bf16; bias stays f32).
    w1p = _pad2d(w1, f_in, f_hid)
    w2p = _pad2d(w2, f_hid, f_emb)
    w3p = _pad2d(w3, f_emb, f_hid)
    w4p = _pad2d(w4, f_hid, f_in)
    b1p = _pad2d(b1.reshape(1, -1), 1, f_hid)
    b2p = _pad2d(b2.reshape(1, -1), 1, f_emb)
    b3p = _pad2d(b3.reshape(1, -1), 1, f_hid)
    b4p = _pad2d(b4.reshape(1, -1), 1, f_in)

    vmem_cap = _vmem_cap_bytes()

    # FUSED-path feasibility: double-buffered bf16 A + x, f32 outputs, plus a
    # handful of f32 (Np, 128)-ish intermediates must fit the budget.
    n128 = _round_up(n, _LANE)
    f_max = max(f_in, f_hid, f_emb)
    fused_need = (2 * (n128 * n128 + n128 * f_in) * 2       # A, x (bf16, double-buf)
                  + 2 * n128 * (f_emb + f_in) * 4           # f32 outputs (double-buf)
                  + 8 * n128 * f_max * 4                    # f32 intermediates
                  + (4 << 20))

    if fused_need <= vmem_cap:
        np_ = n128
        a_bf16 = build_normalized_adjacency_padded_bf16(edge_index, n, np_)
        x_bf16 = _pad2d(x, np_, f_in).astype(jnp.bfloat16)
        enc_p, rec_p = _gcn_fused(
            a_bf16, x_bf16,
            (w1p.astype(jnp.bfloat16), w2p.astype(jnp.bfloat16),
             w3p.astype(jnp.bfloat16), w4p.astype(jnp.bfloat16)),
            (b1p, b2p, b3p, b4p),
            f_emb, f_in, vmem_cap)
        encoding = enc_p[:n, :embedding_dim]
        reconstructed = rec_p[:n, :input_dim]
        return encoding, [reconstructed, encoding]

    # TILED path: per-layer row-tiled kernel; HW = H @ W precomputed by XLA
    # (tiny Np x 128 x 128 op), kernel body is a single bf16 MXU matmul per block.
    tm = min(block_rows, n128)
    np_ = _round_up(n, tm)
    a_bf16 = build_normalized_adjacency_padded_bf16(edge_index, n, np_)

    def hw_of(h_bf16, wp):
        return jnp.dot(h_bf16, wp.astype(jnp.bfloat16),
                       preferred_element_type=jnp.float32).astype(jnp.bfloat16)

    x_bf16 = _pad2d(x, np_, f_in).astype(jnp.bfloat16)
    h1 = _gcn_layer_tiled(a_bf16, hw_of(x_bf16, w1p), b1p, relu=True,
                          out_dtype=jnp.bfloat16, tm=tm, vmem_cap=vmem_cap)
    enc_p = _gcn_layer_tiled(a_bf16, hw_of(h1, w2p), b2p, relu=True,
                             out_dtype=jnp.bfloat16, tm=tm, vmem_cap=vmem_cap)
    h3 = _gcn_layer_tiled(a_bf16, hw_of(enc_p, w3p), b3p, relu=True,
                          out_dtype=jnp.bfloat16, tm=tm, vmem_cap=vmem_cap)
    rec_p = _gcn_layer_tiled(a_bf16, hw_of(h3, w4p), b4p, relu=False,
                             out_dtype=jnp.float32, tm=tm, vmem_cap=vmem_cap)

    encoding = enc_p[:n, :embedding_dim].astype(jnp.float32)
    reconstructed = rec_p[:n, :input_dim]

    # Match torch return structure: (encoding, [reconstructed, encoding])
    return encoding, [reconstructed, encoding]


def init_params(key, input_dim, hidden_dim, embedding_dim):
    """Glorot-uniform weights + zero biases (GCNConv defaults)."""
    def glorot(k, fan_in, fan_out):
        limit = jnp.sqrt(6.0 / (fan_in + fan_out))
        return jax.random.uniform(k, (fan_in, fan_out), jnp.float32,
                                  minval=-limit, maxval=limit)

    ks = jax.random.split(key, 4)
    dims = [(input_dim, hidden_dim),
            (hidden_dim, embedding_dim),
            (embedding_dim, hidden_dim),
            (hidden_dim, input_dim)]
    return tuple((glorot(k, fi, fo), jnp.zeros((fo,), jnp.float32))
                 for k, (fi, fo) in zip(ks, dims))


if __name__ == "__main__":
    key = jax.random.PRNGKey(0)
    k_x, k_e, k_p = jax.random.split(key, 3)

    num_nodes = 256
    input_dim = 8
    hidden_dim = 32
    embedding_dim = 16
    num_edges = 1024

    x = jax.random.normal(k_x, (num_nodes, input_dim), jnp.float32)
    edge_index = jax.random.randint(k_e, (2, num_edges), 0, num_nodes,
                                    dtype=jnp.int32)
    params = init_params(k_p, input_dim, hidden_dim, embedding_dim)

    encoding, (reconstructed, encoding2) = gcn_autoencoder_forward(
        x, edge_index, params)
    jax.block_until_ready((encoding, reconstructed, encoding2))

    # Pure-JAX f32 reference of the same forward pass (loose tol: bf16 MXU feed).
    a_ref = build_normalized_adjacency(edge_index, num_nodes)
    (w1, b1), (w2, b2), (w3, b3), (w4, b4) = params

    def ref_layer(h, w, b, relu):
        out = a_ref @ (h @ w) + b
        return jnp.maximum(out, 0.0) if relu else out

    h1_r = ref_layer(x, w1, b1, True)
    enc_r = ref_layer(h1_r, w2, b2, True)
    h3_r = ref_layer(enc_r, w3, b3, True)
    rec_r = ref_layer(h3_r, w4, b4, False)

    assert encoding.shape == (num_nodes, embedding_dim)
    assert reconstructed.shape == (num_nodes, input_dim)
    assert encoding2.shape == (num_nodes, embedding_dim)
    assert jnp.allclose(encoding, enc_r, rtol=5e-2, atol=5e-2)
    assert jnp.allclose(reconstructed, rec_r, rtol=5e-2, atol=5e-2)
    print("KERNEL_OK")
</pallas_src>

<mosaic_0001>
module attributes {stable_mosaic.version = 11 : i64} {
  func.func @gcn_fused_kernel(%arg0: i32, %arg1: memref<256x256xbf16, #tpu.memory_space<vmem>>, %arg2: memref<256x128xbf16, #tpu.memory_space<vmem>>, %arg3: memref<128x128xbf16, #tpu.memory_space<vmem>>, %arg4: memref<1x128xf32, #tpu.memory_space<vmem>>, %arg5: memref<128x128xbf16, #tpu.memory_space<vmem>>, %arg6: memref<1x128xf32, #tpu.memory_space<vmem>>, %arg7: memref<128x128xbf16, #tpu.memory_space<vmem>>, %arg8: memref<1x128xf32, #tpu.memory_space<vmem>>, %arg9: memref<128x128xbf16, #tpu.memory_space<vmem>>, %arg10: memref<1x128xf32, #tpu.memory_space<vmem>>, %arg11: memref<256x128xf32, #tpu.memory_space<vmem>>, %arg12: memref<256x128xf32, #tpu.memory_space<vmem>>) attributes {dimension_semantics = [#tpu.dimension_semantics<arbitrary>], iteration_bounds = array<i64: 1>, scalar_prefetch = 0 : i64, scratch_operands = 0 : i64, tpu.core_type = #tpu.core_type<tc>, window_params = [{pipeline_mode = #tpu.pipeline_mode<synchronous>, transform_indices = @transform_0, window_bounds = array<i64: 256, 256>}, {pipeline_mode = #tpu.pipeline_mode<synchronous>, transform_indices = @transform_1, window_bounds = array<i64: 256, 128>}, {pipeline_mode = #tpu.pipeline_mode<synchronous>, transform_indices = @transform_2, window_bounds = array<i64: 128, 128>}, {pipeline_mode = #tpu.pipeline_mode<synchronous>, transform_indices = @transform_3, window_bounds = array<i64: 1, 128>}, {pipeline_mode = #tpu.pipeline_mode<synchronous>, transform_indices = @transform_4, window_bounds = array<i64: 128, 128>}, {pipeline_mode = #tpu.pipeline_mode<synchronous>, transform_indices = @transform_5, window_bounds = array<i64: 1, 128>}, {pipeline_mode = #tpu.pipeline_mode<synchronous>, transform_indices = @transform_6, window_bounds = array<i64: 128, 128>}, {pipeline_mode = #tpu.pipeline_mode<synchronous>, transform_indices = @transform_7, window_bounds = array<i64: 1, 128>}, {pipeline_mode = #tpu.pipeline_mode<synchronous>, transform_indices = @transform_8, window_bounds = array<i64: 128, 128>}, {pipeline_mode = #tpu.pipeline_mode<synchronous>, transform_indices = @transform_9, window_bounds = array<i64: 1, 128>}, {pipeline_mode = #tpu.pipeline_mode<synchronous>, transform_indices = @transform_10, window_bounds = array<i64: 256, 128>}, {pipeline_mode = #tpu.pipeline_mode<synchronous>, transform_indices = @transform_11, window_bounds = array<i64: 256, 128>}]} {
    %c0 = arith.constant 0 : index
    %c0_0 = arith.constant 0 : index
    %0 = vector.load %arg1[%c0, %c0_0] : memref<256x256xbf16, #tpu.memory_space<vmem>>, vector<256x256xbf16>
    %c0_1 = arith.constant 0 : index
    %c0_2 = arith.constant 0 : index
    %1 = vector.load %arg2[%c0_1, %c0_2] : memref<256x128xbf16, #tpu.memory_space<vmem>>, vector<256x128xbf16>
    %c0_3 = arith.constant 0 : index
    %c0_4 = arith.constant 0 : index
    %2 = vector.load %arg3[%c0_3, %c0_4] : memref<128x128xbf16, #tpu.memory_space<vmem>>, vector<128x128xbf16>
    %cst = arith.constant dense<0.000000e+00> : vector<256x128xf32>
    %3 = tpu.matmul %1, %2, %cst {dimension_numbers = #tpu.dot_dimension_numbers<[1], [0], [0], [1], [0, 0, 1, 1], [], []>} : vector<256x128xbf16>, vector<128x128xbf16>, vector<256x128xf32> -> vector<256x128xf32>
    %4 = arith.truncf %3 : vector<256x128xf32> to vector<256x128xbf16>
    %cst_5 = arith.constant dense<0.000000e+00> : vector<256x128xf32>
    %5 = tpu.matmul %0, %4, %cst_5 {dimension_numbers = #tpu.dot_dimension_numbers<[1], [0], [0], [1], [0, 0, 1, 1], [], []>} : vector<256x256xbf16>, vector<256x128xbf16>, vector<256x128xf32> -> vector<256x128xf32>
    %c0_6 = arith.constant 0 : index
    %c0_7 = arith.constant 0 : index
    %6 = vector.load %arg4[%c0_6, %c0_7] : memref<1x128xf32, #tpu.memory_space<vmem>>, vector<1x128xf32>
    %7 = vector.broadcast %6 : vector<1x128xf32> to vector<256x128xf32>
    %8 = arith.addf %5, %7 : vector<256x128xf32>
    %cst_8 = arith.constant 0.000000e+00 : f32
    %9 = vector.broadcast %cst_8 : f32 to vector<256x128xf32>
    %10 = arith.maximumf %8, %9 : vector<256x128xf32>
    %11 = arith.truncf %10 : vector<256x128xf32> to vector<256x128xbf16>
    %c0_9 = arith.constant 0 : index
    %c0_10 = arith.constant 0 : index
    %12 = vector.load %arg5[%c0_9, %c0_10] : memref<128x128xbf16, #tpu.memory_space<vmem>>, vector<128x128xbf16>
    %cst_11 = arith.constant dense<0.000000e+00> : vector<256x128xf32>
    %13 = tpu.matmul %11, %12, %cst_11 {dimension_numbers = #tpu.dot_dimension_numbers<[1], [0], [0], [1], [0, 0, 1, 1], [], []>} : vector<256x128xbf16>, vector<128x128xbf16>, vector<256x128xf32> -> vector<256x128xf32>
    %14 = arith.truncf %13 : vector<256x128xf32> to vector<256x128xbf16>
    %cst_12 = arith.constant dense<0.000000e+00> : vector<256x128xf32>
    %15 = tpu.matmul %0, %14, %cst_12 {dimension_numbers = #tpu.dot_dimension_numbers<[1], [0], [0], [1], [0, 0, 1, 1], [], []>} : vector<256x256xbf16>, vector<256x128xbf16>, vector<256x128xf32> -> vector<256x128xf32>
    %c0_13 = arith.constant 0 : index
    %c0_14 = arith.constant 0 : index
    %16 = vector.load %arg6[%c0_13, %c0_14] : memref<1x128xf32, #tpu.memory_space<vmem>>, vector<1x128xf32>
    %17 = vector.broadcast %16 : vector<1x128xf32> to vector<256x128xf32>
    %18 = arith.addf %15, %17 : vector<256x128xf32>
    %cst_15 = arith.constant 0.000000e+00 : f32
    %19 = vector.broadcast %cst_15 : f32 to vector<256x128xf32>
    %20 = arith.maximumf %18, %19 : vector<256x128xf32>
    %c0_16 = arith.constant 0 : index
    %c0_17 = arith.constant 0 : index
    %21 = vector.load %arg11[%c0_16, %c0_17] : memref<256x128xf32, #tpu.memory_space<vmem>>, vector<256x128xf32>
    tpu.vector_store %arg11[%c0_16, %c0_17], %20 {strides = array<i32>} : memref<256x128xf32, #tpu.memory_space<vmem>>, vector<256x128xf32>,
    %22 = arith.truncf %20 : vector<256x128xf32> to vector<256x128xbf16>
    %c0_18 = arith.constant 0 : index
    %c0_19 = arith.constant 0 : index
    %23 = vector.load %arg7[%c0_18, %c0_19] : memref<128x128xbf16, #tpu.memory_space<vmem>>, vector<128x128xbf16>
    %cst_20 = arith.constant dense<0.000000e+00> : vector<256x128xf32>
    %24 = tpu.matmul %22, %23, %cst_20 {dimension_numbers = #tpu.dot_dimension_numbers<[1], [0], [0], [1], [0, 0, 1, 1], [], []>} : vector<256x128xbf16>, vector<128x128xbf16>, vector<256x128xf32> -> vector<256x128xf32>
    %25 = arith.truncf %24 : vector<256x128xf32> to vector<256x128xbf16>
    %cst_21 = arith.constant dense<0.000000e+00> : vector<256x128xf32>
    %26 = tpu.matmul %0, %25, %cst_21 {dimension_numbers = #tpu.dot_dimension_numbers<[1], [0], [0], [1], [0, 0, 1, 1], [], []>} : vector<256x256xbf16>, vector<256x128xbf16>, vector<256x128xf32> -> vector<256x128xf32>
    %c0_22 = arith.constant 0 : index
    %c0_23 = arith.constant 0 : index
    %27 = vector.load %arg8[%c0_22, %c0_23] : memref<1x128xf32, #tpu.memory_space<vmem>>, vector<1x128xf32>
    %28 = vector.broadcast %27 : vector<1x128xf32> to vector<256x128xf32>
    %29 = arith.addf %26, %28 : vector<256x128xf32>
    %cst_24 = arith.constant 0.000000e+00 : f32
    %30 = vector.broadcast %cst_24 : f32 to vector<256x128xf32>
    %31 = arith.maximumf %29, %30 : vector<256x128xf32>
    %32 = arith.truncf %31 : vector<256x128xf32> to vector<256x128xbf16>
    %c0_25 = arith.constant 0 : index
    %c0_26 = arith.constant 0 : index
    %33 = vector.load %arg9[%c0_25, %c0_26] : memref<128x128xbf16, #tpu.memory_space<vmem>>, vector<128x128xbf16>
    %cst_27 = arith.constant dense<0.000000e+00> : vector<256x128xf32>
    %34 = tpu.matmul %32, %33, %cst_27 {dimension_numbers = #tpu.dot_dimension_numbers<[1], [0], [0], [1], [0, 0, 1, 1], [], []>} : vector<256x128xbf16>, vector<128x128xbf16>, vector<256x128xf32> -> vector<256x128xf32>
    %35 = arith.truncf %34 : vector<256x128xf32> to vector<256x128xbf16>
    %cst_28 = arith.constant dense<0.000000e+00> : vector<256x128xf32>
    %36 = tpu.matmul %0, %35, %cst_28 {dimension_numbers = #tpu.dot_dimension_numbers<[1], [0], [0], [1], [0, 0, 1, 1], [], []>} : vector<256x256xbf16>, vector<256x128xbf16>, vector<256x128xf32> -> vector<256x128xf32>
    %c0_29 = arith.constant 0 : index
    %c0_30 = arith.constant 0 : index
    %37 = vector.load %arg10[%c0_29, %c0_30] : memref<1x128xf32, #tpu.memory_space<vmem>>, vector<1x128xf32>
    %38 = vector.broadcast %37 : vector<1x128xf32> to vector<256x128xf32>
    %39 = arith.addf %36, %38 : vector<256x128xf32>
    %c0_31 = arith.constant 0 : index
    %c0_32 = arith.constant 0 : index
    %40 = vector.load %arg12[%c0_31, %c0_32] : memref<256x128xf32, #tpu.memory_space<vmem>>, vector<256x128xf32>
    tpu.vector_store %arg12[%c0_31, %c0_32], %39 {strides = array<i32>} : memref<256x128xf32, #tpu.memory_space<vmem>>, vector<256x128xf32>,
    return
  }
  func.func @transform_0(%arg0: i32) -> (i32, i32) {
    %c0_i32 = arith.constant 0 : i32
    %c0_i32_0 = arith.constant 0 : i32
    %c0_i32_1 = arith.constant 0 : i32
    return %c0_i32, %c0_i32_0 : i32, i32
  }
  func.func @transform_1(%arg0: i32) -> (i32, i32) {
    %c0_i32 = arith.constant 0 : i32
    %c0_i32_0 = arith.constant 0 : i32
    %c0_i32_1 = arith.constant 0 : i32
    return %c0_i32, %c0_i32_0 : i32, i32
  }
  func.func @transform_2(%arg0: i32) -> (i32, i32) {
    %c0_i32 = arith.constant 0 : i32
    %c0_i32_0 = arith.constant 0 : i32
    %c0_i32_1 = arith.constant 0 : i32
    return %c0_i32, %c0_i32_0 : i32, i32
  }
  func.func @transform_3(%arg0: i32) -> (i32, i32) {
    %c0_i32 = arith.constant 0 : i32
    %c0_i32_0 = arith.constant 0 : i32
    %c0_i32_1 = arith.constant 0 : i32
    return %c0_i32, %c0_i32_0 : i32, i32
  }
  func.func @transform_4(%arg0: i32) -> (i32, i32) {
    %c0_i32 = arith.constant 0 : i32
    %c0_i32_0 = arith.constant 0 : i32
    %c0_i32_1 = arith.constant 0 : i32
    return %c0_i32, %c0_i32_0 : i32, i32
  }
  func.func @transform_5(%arg0: i32) -> (i32, i32) {
    %c0_i32 = arith.constant 0 : i32
    %c0_i32_0 = arith.constant 0 : i32
    %c0_i32_1 = arith.constant 0 : i32
    return %c0_i32, %c0_i32_0 : i32, i32
  }
  func.func @transform_6(%arg0: i32) -> (i32, i32) {
    %c0_i32 = arith.constant 0 : i32
    %c0_i32_0 = arith.constant 0 : i32
    %c0_i32_1 = arith.constant 0 : i32
    return %c0_i32, %c0_i32_0 : i32, i32
  }
  func.func @transform_7(%arg0: i32) -> (i32, i32) {
    %c0_i32 = arith.constant 0 : i32
    %c0_i32_0 = arith.constant 0 : i32
    %c0_i32_1 = arith.constant 0 : i32
    return %c0_i32, %c0_i32_0 : i32, i32
  }
  func.func @transform_8(%arg0: i32) -> (i32, i32) {
    %c0_i32 = arith.constant 0 : i32
    %c0_i32_0 = arith.constant 0 : i32
    %c0_i32_1 = arith.constant 0 : i32
    return %c0_i32, %c0_i32_0 : i32, i32
  }
  func.func @transform_9(%arg0: i32) -> (i32, i32) {
    %c0_i32 = arith.constant 0 : i32
    %c0_i32_0 = arith.constant 0 : i32
    %c0_i32_1 = arith.constant 0 : i32
    return %c0_i32, %c0_i32_0 : i32, i32
  }
  func.func @transform_10(%arg0: i32) -> (i32, i32) {
    %c0_i32 = arith.constant 0 : i32
    %c0_i32_0 = arith.constant 0 : i32
    %c0_i32_1 = arith.constant 0 : i32
    return %c0_i32, %c0_i32_0 : i32, i32
  }
  func.func @transform_11(%arg0: i32) -> (i32, i32) {
    %c0_i32 = arith.constant 0 : i32
    %c0_i32_0 = arith.constant 0 : i32
    %c0_i32_1 = arith.constant 0 : i32
    return %c0_i32, %c0_i32_0 : i32, i32
  }
}

</mosaic_0001>

<llo_original>
// kernel: tpu_custom_call.1
$region0: #{tpu_custom_call.1}
  #allocation0 [shape = 'u32[]', space=smem, size = 0x4, offset = 0x4, fixed_abs, tag = 'smem constant byte address 0x4 - core index']
  #allocation1 [shape = 'u32[144,128]{1,0:T(1,128)}', space=vmem, size = 0x12000, scoped, tag = 'internal scratch']
  %s0 = inlined_call_operand.hbm [shape: bf16[256,256], index: 0, kind: input, shape index: {}]
  %s1 = inlined_call_operand.hbm [shape: bf16[256,128], index: 1, kind: input, shape index: {}]
  %s2 = inlined_call_operand.hbm [shape: bf16[128,128], index: 2, kind: input, shape index: {}]
  %s3 = inlined_call_operand.vmem [shape: f32[1,128], index: 3, kind: input, shape index: {}]
  %s4 = inlined_call_operand.hbm [shape: bf16[128,128], index: 4, kind: input, shape index: {}]
  %s5 = inlined_call_operand.vmem [shape: f32[1,128], index: 5, kind: input, shape index: {}]
  %s6 = inlined_call_operand.hbm [shape: bf16[128,128], index: 6, kind: input, shape index: {}]
  %s7 = inlined_call_operand.vmem [shape: f32[1,128], index: 7, kind: input, shape index: {}]
  %s8 = inlined_call_operand.hbm [shape: bf16[128,128], index: 8, kind: input, shape index: {}]
  %s9 = inlined_call_operand.vmem [shape: f32[1,128], index: 9, kind: input, shape index: {}]
  %s10 = inlined_call_operand.hbm [shape: f32[256,128], index: 10, kind: output, shape index: {0}]
  %s11 = inlined_call_operand.hbm [shape: f32[256,128], index: 11, kind: output, shape index: {1}]
  %12 = xla_tuple %s10, %s11
  %s13 = sld [smem:[#allocation0]]
  $region82: #{tpu_custom_call.1} parent=0
    _
  %s15 = ssub.s32 1, %s13
  %s16 = scalar_select 0, %s15, %s13
  $region1: #{tpu_custom_call.1} parent=0
    #allocation2 [shape = 'u8[131072]{0}', space=vmem, size = 0x20000, scoped, tag = 'input window, operand 0, single buffered']
    #allocation3 [shape = 's32[1]{0}', space=sflag, size = 0x4, scoped, tag = 'scoped memory for tpu_custom_call.1']
    #allocation4 [shape = 's32[1]{0}', space=sflag, size = 0x4, scoped, tag = 'scoped memory for tpu_custom_call.1']
    #allocation5 [shape = 'u8[65536]{0}', space=vmem, size = 0x10000, scoped, tag = 'input window, operand 1, single buffered']
    #allocation6 [shape = 's32[1]{0}', space=sflag, size = 0x4, scoped, tag = 'scoped memory for tpu_custom_call.1']
    #allocation7 [shape = 'u8[32768]{0}', space=vmem, size = 0x8000, scoped, tag = 'input window, operand 2, single buffered']
    #allocation8 [shape = 'u8[32768]{0}', space=vmem, size = 0x8000, scoped, tag = 'input window, operand 4, single buffered']
    #allocation9 [shape = 's32[1]{0}', space=sflag, size = 0x4, scoped, tag = 'scoped memory for tpu_custom_call.1']
    #allocation10 [shape = 'u8[32768]{0}', space=vmem, size = 0x8000, scoped, tag = 'input window, operand 6, single buffered']
    #allocation11 [shape = 'u8[32768]{0}', space=vmem, size = 0x8000, scoped, tag = 'input window, operand 8, single buffered']
    #allocation12 [shape = 's32[1]{0}', space=sflag, size = 0x4, scoped, tag = 'scoped memory for tpu_custom_call.1']
    #allocation13 [shape = 'u8[131072]{0}', space=vmem, size = 0x20000, scoped, tag = 'output window, operand 0, single buffered']
    #allocation14 [shape = 'u8[131072]{0}', space=vmem, size = 0x20000, scoped, tag = 'output window, operand 1, single buffered']
    #allocation15 [shape = 's32[1]{0}', space=sflag, size = 0x4, scoped, tag = 'scoped memory for tpu_custom_call.1']
    %17 = vsyncpa [#allocation3], 0
    %18 = vsyncpa [#allocation6], 0
    %19 = vsyncpa [#allocation9], 0
    %20 = vsyncpa [#allocation12], 0
    %21 = vsyncpa [#allocation4], 0
    %22 = vsyncpa [#allocation15], 0
    // Predicated region
    $region2: #{tpu_custom_call.1} parent=1 // pred_check
      _
    $region3: #{tpu_custom_call.1} parent=1 // pred_check_branch
      %24 = sbr.rel (0) target = $region5
    $region4: #{tpu_custom_call.1} parent=1 // pred_region
      %s26 = ssub.s32 4096, 4096
      %27 = vsyncadd [#allocation3], %s26
      %s28 = sshll.u32 [#allocation2], 4
      %s29 = int_to_ptr.vmem [resolvable:$true] %s28
      %34 = dma.hbm_to_vmem [thread:$0]  %s0, 4096, %s29, [#allocation3], 128, 128, 8
    $region5: #{tpu_custom_call.1} parent=1 // pred_fallthru
      _
    // Predicated region
    $region6: #{tpu_custom_call.1} parent=1 // pred_check
      _
    $region7: #{tpu_custom_call.1} parent=1 // pred_check_branch
      %36 = sbr.rel (0) target = $region9
    $region8: #{tpu_custom_call.1} parent=1 // pred_region
      %s38 = ssub.s32 2048, 2048
      %39 = vsyncadd [#allocation6], %s38
      %s40 = sshll.u32 [#allocation5], 4
      %s41 = int_to_ptr.vmem [resolvable:$true] %s40
      %46 = dma.hbm_to_vmem [thread:$0]  %s1, 2048, %s41, [#allocation6], 64, 64, 4
    $region9: #{tpu_custom_call.1} parent=1 // pred_fallthru
      _
    // Predicated region
    $region10: #{tpu_custom_call.1} parent=1 // pred_check
      _
    $region11: #{tpu_custom_call.1} parent=1 // pred_check_branch
      %48 = sbr.rel (0) target = $region13
    $region12: #{tpu_custom_call.1} parent=1 // pred_region
      %s50 = ssub.s32 1024, 1024
      %51 = vsyncadd [#allocation6], %s50
      %s52 = sshll.u32 [#allocation7], 4
      %s53 = int_to_ptr.vmem [resolvable:$true] %s52
      %58 = dma.hbm_to_vmem [thread:$0]  %s2, 1024, %s53, [#allocation6], 64, 64, 4
    $region13: #{tpu_custom_call.1} parent=1 // pred_fallthru
      _
    // Predicated region
    $region14: #{tpu_custom_call.1} parent=1 // pred_check
      _
    $region15: #{tpu_custom_call.1} parent=1 // pred_check_branch
      %60 = sbr.rel (0) target = $region17
    $region16: #{tpu_custom_call.1} parent=1 // pred_region
      _
    $region17: #{tpu_custom_call.1} parent=1 // pred_fallthru
      _
    // Predicated region
    $region18: #{tpu_custom_call.1} parent=1 // pred_check
      _
    $region19: #{tpu_custom_call.1} parent=1 // pred_check_branch
      %62 = sbr.rel (0) target = $region21
    $region20: #{tpu_custom_call.1} parent=1 // pred_region
      %s64 = ssub.s32 1024, 1024
      %65 = vsyncadd [#allocation9], %s64
      %s66 = sshll.u32 [#allocation8], 4
      %s67 = int_to_ptr.vmem [resolvable:$true] %s66
      %72 = dma.hbm_to_vmem [thread:$0]  %s4, 1024, %s67, [#allocation9], 64, 64, 4
    $region21: #{tpu_custom_call.1} parent=1 // pred_fallthru
      _
    // Predicated region
    $region22: #{tpu_custom_call.1} parent=1 // pred_check
      _
    $region23: #{tpu_custom_call.1} parent=1 // pred_check_branch
      %74 = sbr.rel (0) target = $region25
    $region24: #{tpu_custom_call.1} parent=1 // pred_region
      _
    $region25: #{tpu_custom_call.1} parent=1 // pred_fallthru
      _
    // Predicated region
    $region26: #{tpu_custom_call.1} parent=1 // pred_check
      _
    $region27: #{tpu_custom_call.1} parent=1 // pred_check_branch
      %76 = sbr.rel (0) target = $region29
    $region28: #{tpu_custom_call.1} parent=1 // pred_region
      %s78 = ssub.s32 1024, 1024
      %79 = vsyncadd [#allocation9], %s78
      %s80 = sshll.u32 [#allocation10], 4
      %s81 = int_to_ptr.vmem [resolvable:$true] %s80
      %86 = dma.hbm_to_vmem [thread:$0]  %s6, 1024, %s81, [#allocation9], 64, 64, 4
    $region29: #{tpu_custom_call.1} parent=1 // pred_fallthru
      _
    // Predicated region
    $region30: #{tpu_custom_call.1} parent=1 // pred_check
      _
    $region31: #{tpu_custom_call.1} parent=1 // pred_check_branch
      %88 = sbr.rel (0) target = $region33
    $region32: #{tpu_custom_call.1} parent=1 // pred_region
      _
    $region33: #{tpu_custom_call.1} parent=1 // pred_fallthru
      _
    // Predicated region
    $region34: #{tpu_custom_call.1} parent=1 // pred_check
      _
    $region35: #{tpu_custom_call.1} parent=1 // pred_check_branch
      %90 = sbr.rel (0) target = $region37
    $region36: #{tpu_custom_call.1} parent=1 // pred_region
      %s92 = ssub.s32 1024, 1024
      %93 = vsyncadd [#allocation12], %s92
      %s94 = sshll.u32 [#allocation11], 4
      %s95 = int_to_ptr.vmem [resolvable:$true] %s94
      %100 = dma.hbm_to_vmem [thread:$0]  %s8, 1024, %s95, [#allocation12], 64, 64, 4
    $region37: #{tpu_custom_call.1} parent=1 // pred_fallthru
      _
    // Predicated region
    $region38: #{tpu_custom_call.1} parent=1 // pred_check
      _
    $region39: #{tpu_custom_call.1} parent=1 // pred_check_branch
      %102 = sbr.rel (0) target = $region41
    $region40: #{tpu_custom_call.1} parent=1 // pred_region
      _
    $region41: #{tpu_custom_call.1} parent=1 // pred_fallthru
      _
    // Predicated region
    $region42: #{tpu_custom_call.1} parent=1 // pred_check
      _
    $region43: #{tpu_custom_call.1} parent=1 // pred_check_branch
      %104 = sbr.rel (0) target = $region45
    $region44: #{tpu_custom_call.1} parent=1 // pred_region
      %105 = dma.done [#allocation3], 4096
    $region45: #{tpu_custom_call.1} parent=1 // pred_fallthru
      _
    // Predicated region
    $region46: #{tpu_custom_call.1} parent=1 // pred_check
      _
    $region47: #{tpu_custom_call.1} parent=1 // pred_check_branch
      %107 = sbr.rel (0) target = $region49
    $region48: #{tpu_custom_call.1} parent=1 // pred_region
      %108 = dma.done [#allocation6], 2048
    $region49: #{tpu_custom_call.1} parent=1 // pred_fallthru
      _
    // Predicated region
    $region50: #{tpu_custom_call.1} parent=1 // pred_check
      _
    $region51: #{tpu_custom_call.1} parent=1 // pred_check_branch
      %110 = sbr.rel (0) target = $region53
    $region52: #{tpu_custom_call.1} parent=1 // pred_region
      %111 = dma.done [#allocation6], 1024
    $region53: #{tpu_custom_call.1} parent=1 // pred_fallthru
      _
    // Predicated region
    $region54: #{tpu_custom_call.1} parent=1 // pred_check
      _
    $region55: #{tpu_custom_call.1} parent=1 // pred_check_branch
      %113 = sbr.rel (0) target = $region57
    $region56: #{tpu_custom_call.1} parent=1 // pred_region
      %114 = dma.done [#allocation9], 1024
    $region57: #{tpu_custom_call.1} parent=1 // pred_fallthru
      _
    // Predicated region
    $region58: #{tpu_custom_call.1} parent=1 // pred_check
      _
    $region59: #{tpu_custom_call.1} parent=1 // pred_check_branch
      %116 = sbr.rel (0) target = $region61
    $region60: #{tpu_custom_call.1} parent=1 // pred_region
      %117 = dma.done [#allocation9], 1024
    $region61: #{tpu_custom_call.1} parent=1 // pred_fallthru
      _
    // Predicated region
    $region62: #{tpu_custom_call.1} parent=1 // pred_check
      _
    $region63: #{tpu_custom_call.1} parent=1 // pred_check_branch
      %119 = sbr.rel (0) target = $region65
    $region64: #{tpu_custom_call.1} parent=1 // pred_region
      %120 = dma.done [#allocation12], 1024
    $region65: #{tpu_custom_call.1} parent=1 // pred_fallthru
      _
    %v122 = vld [vmem:[#allocation2] sm:$0xff]
    %v123 = vld [vmem:[#allocation2 + $0x8] sm:$0xff]
    %v124 = vld [vmem:[#allocation2 + $0x10] sm:$0xff]
    %v125 = vld [vmem:[#allocation2 + $0x18] sm:$0xff]
    %v126 = vld [vmem:[#allocation2 + $0x20] sm:$0xff]
    %v127 = vld [vmem:[#allocation2 + $0x28] sm:$0xff]
    %v128 = vld [vmem:[#allocation2 + $0x30] sm:$0xff]
    %v129 = vld [vmem:[#allocation2 + $0x38] sm:$0xff]
    %v130 = vld [vmem:[#allocation2 + $0x40] sm:$0xff]
    %v131 = vld [vmem:[#allocation2 + $0x48] sm:$0xff]
    %v132 = vld [vmem:[#allocation2 + $0x50] sm:$0xff]
    %v133 = vld [vmem:[#allocation2 + $0x58] sm:$0xff]
    %v134 = vld [vmem:[#allocation2 + $0x60] sm:$0xff]
    %v135 = vld [vmem:[#allocation2 + $0x68] sm:$0xff]
    %v136 = vld [vmem:[#allocation2 + $0x70] sm:$0xff]
    %v137 = vld [vmem:[#allocation2 + $0x78] sm:$0xff]
    %v138 = vld [vmem:[#allocation2 + $0x80] sm:$0xff]
    %v139 = vld [vmem:[#allocation2 + $0x88] sm:$0xff]
    %v140 = vld [vmem:[#allocation2 + $0x90] sm:$0xff]
    %v141 = vld [vmem:[#allocation2 + $0x98] sm:$0xff]
    %v142 = vld [vmem:[#allocation2 + $0xa0] sm:$0xff]
    %v143 = vld [vmem:[#allocation2 + $0xa8] sm:$0xff]
    %v144 = vld [vmem:[#allocation2 + $0xb0] sm:$0xff]
    %v145 = vld [vmem:[#allocation2 + $0xb8] sm:$0xff]
    %v146 = vld [vmem:[#allocation2 + $0xc0] sm:$0xff]
    %v147 = vld [vmem:[#allocation2 + $0xc8] sm:$0xff]
    %v148 = vld [vmem:[#allocation2 + $0xd0] sm:$0xff]
    %v149 = vld [vmem:[#allocation2 + $0xd8] sm:$0xff]
    %v150 = vld [vmem:[#allocation2 + $0xe0] sm:$0xff]
    %v151 = vld [vmem:[#allocation2 + $0xe8] sm:$0xff]
    %v152 = vld [vmem:[#allocation2 + $0xf0] sm:$0xff]
    %v153 = vld [vmem:[#allocation2 + $0xf8] sm:$0xff]
    %v154 = vld [vmem:[#allocation5] sm:$0xf]
    %v155 = vld [vmem:[#allocation5 + $0x4] sm:$0xf]
    %v156 = vld [vmem:[#allocation5 + $0x8] sm:$0xf]
    %v157 = vld [vmem:[#allocation5 + $0xc] sm:$0xf]
    %v158 = vld [vmem:[#allocation5 + $0x10] sm:$0xf]
    %v159 = vld [vmem:[#allocation5 + $0x14] sm:$0xf]
    %v160 = vld [vmem:[#allocation5 + $0x18] sm:$0xf]
    %v161 = vld [vmem:[#allocation5 + $0x1c] sm:$0xf]
    %v162 = vld [vmem:[#allocation5 + $0x20] sm:$0xf]
    %v163 = vld [vmem:[#allocation5 + $0x24] sm:$0xf]
    %v164 = vld [vmem:[#allocation5 + $0x28] sm:$0xf]
    %v165 = vld [vmem:[#allocation5 + $0x2c] sm:$0xf]
    %v166 = vld [vmem:[#allocation5 + $0x30] sm:$0xf]
    %v167 = vld [vmem:[#allocation5 + $0x34] sm:$0xf]
    %v168 = vld [vmem:[#allocation5 + $0x38] sm:$0xf]
    %v169 = vld [vmem:[#allocation5 + $0x3c] sm:$0xf]
    %v170 = vld [vmem:[#allocation5 + $0x40] sm:$0xf]
    %v171 = vld [vmem:[#allocation5 + $0x44] sm:$0xf]
    %v172 = vld [vmem:[#allocation5 + $0x48] sm:$0xf]
    %v173 = vld [vmem:[#allocation5 + $0x4c] sm:$0xf]
    %v174 = vld [vmem:[#allocation5 + $0x50] sm:$0xf]
    %v175 = vld [vmem:[#allocation5 + $0x54] sm:$0xf]
    %v176 = vld [vmem:[#allocation5 + $0x58] sm:$0xf]
    %v177 = vld [vmem:[#allocation5 + $0x5c] sm:$0xf]
    %v178 = vld [vmem:[#allocation5 + $0x60] sm:$0xf]
    %v179 = vld [vmem:[#allocation5 + $0x64] sm:$0xf]
    %v180 = vld [vmem:[#allocation5 + $0x68] sm:$0xf]
    %v181 = vld [vmem:[#allocation5 + $0x6c] sm:$0xf]
    %v182 = vld [vmem:[#allocation5 + $0x70] sm:$0xf]
    %v183 = vld [vmem:[#allocation5 + $0x74] sm:$0xf]
    %v184 = vld [vmem:[#allocation5 + $0x78] sm:$0xf]
    %v185 = vld [vmem:[#allocation5 + $0x7c] sm:$0xf]
    %v186 = vld [vmem:[#allocation7] sm:$0xf]
    %v187 = vld [vmem:[#allocation7 + $0x4] sm:$0xf]
    %v188 = vld [vmem:[#allocation7 + $0x8] sm:$0xf]
    %v189 = vld [vmem:[#allocation7 + $0xc] sm:$0xf]
    %v190 = vld [vmem:[#allocation7 + $0x10] sm:$0xf]
    %v191 = vld [vmem:[#allocation7 + $0x14] sm:$0xf]
    %v192 = vld [vmem:[#allocation7 + $0x18] sm:$0xf]
    %v193 = vld [vmem:[#allocation7 + $0x1c] sm:$0xf]
    %v194 = vld [vmem:[#allocation7 + $0x20] sm:$0xf]
    %v195 = vld [vmem:[#allocation7 + $0x24] sm:$0xf]
    %v196 = vld [vmem:[#allocation7 + $0x28] sm:$0xf]
    %v197 = vld [vmem:[#allocation7 + $0x2c] sm:$0xf]
    %v198 = vld [vmem:[#allocation7 + $0x30] sm:$0xf]
    %v199 = vld [vmem:[#allocation7 + $0x34] sm:$0xf]
    %v200 = vld [vmem:[#allocation7 + $0x38] sm:$0xf]
    %v201 = vld [vmem:[#allocation7 + $0x3c] sm:$0xf]
    %v234 = vunpack.c.l.b16 %v154
    %v235 = vunpack.c.l.b16 %v155
    %v236 = vunpack.c.l.b16 %v156
    %v237 = vunpack.c.l.b16 %v157
    %v238 = vunpack.c.l.b16 %v158
    %v239 = vunpack.c.l.b16 %v159
    %v240 = vunpack.c.l.b16 %v160
    %v241 = vunpack.c.l.b16 %v161
    %v242 = vunpack.c.l.b16 %v162
    %v243 = vunpack.c.l.b16 %v163
    %v244 = vunpack.c.l.b16 %v164
    %v245 = vunpack.c.l.b16 %v165
    %v246 = vunpack.c.l.b16 %v166
    %v247 = vunpack.c.l.b16 %v167
    %v248 = vunpack.c.l.b16 %v168
    %v249 = vunpack.c.l.b16 %v169
    %v250 = vunpack.c.l.b16 %v170
    %v251 = vunpack.c.l.b16 %v171
    %v252 = vunpack.c.l.b16 %v172
    %v253 = vunpack.c.l.b16 %v173
    %v254 = vunpack.c.l.b16 %v174
    %v255 = vunpack.c.l.b16 %v175
    %v256 = vunpack.c.l.b16 %v176
    %v257 = vunpack.c.l.b16 %v177
    %v258 = vunpack.c.l.b16 %v178
    %v259 = vunpack.c.l.b16 %v179
    %v260 = vunpack.c.l.b16 %v180
    %v261 = vunpack.c.l.b16 %v181
    %v262 = vunpack.c.l.b16 %v182
    %v263 = vunpack.c.l.b16 %v183
    %v264 = vunpack.c.l.b16 %v184
    %v265 = vunpack.c.l.b16 %v185
    %v266 = vpack.c.b16 %v235, %v234
    %v267 = vpack.c.b16 %v237, %v236
    %v268 = vpack.c.b16 %v239, %v238
    %v269 = vpack.c.b16 %v241, %v240
    %v270 = vpack.c.b16 %v243, %v242
    %v271 = vpack.c.b16 %v245, %v244
    %v272 = vpack.c.b16 %v247, %v246
    %v273 = vpack.c.b16 %v249, %v248
    %v274 = vpack.c.b16 %v251, %v250
    %v275 = vpack.c.b16 %v253, %v252
    %v276 = vpack.c.b16 %v255, %v254
    %v277 = vpack.c.b16 %v257, %v256
    %v278 = vpack.c.b16 %v259, %v258
    %v279 = vpack.c.b16 %v261, %v260
    %v280 = vpack.c.b16 %v263, %v262
    %v281 = vpack.c.b16 %v265, %v264
    %v314 = vunpack.c.l.b16 %v186
    %v315 = vunpack.c.l.b16 %v187
    %v316 = vunpack.c.l.b16 %v188
    %v317 = vunpack.c.l.b16 %v189
    %v318 = vunpack.c.l.b16 %v190
    %v319 = vunpack.c.l.b16 %v191
    %v320 = vunpack.c.l.b16 %v192
    %v321 = vunpack.c.l.b16 %v193
    %v322 = vunpack.c.l.b16 %v194
    %v323 = vunpack.c.l.b16 %v195
    %v324 = vunpack.c.l.b16 %v196
    %v325 = vunpack.c.l.b16 %v197
    %v326 = vunpack.c.l.b16 %v198
    %v327 = vunpack.c.l.b16 %v199
    %v328 = vunpack.c.l.b16 %v200
    %v329 = vunpack.c.l.b16 %v201
    %v330 = vpack.c.b16 %v315, %v314
    %v331 = vpack.c.b16 %v317, %v316
    %v332 = vpack.c.b16 %v319, %v318
    %v333 = vpack.c.b16 %v321, %v320
    %v334 = vpack.c.b16 %v323, %v322
    %v335 = vpack.c.b16 %v325, %v324
    %v336 = vpack.c.b16 %v327, %v326
    %v337 = vpack.c.b16 %v329, %v328
    %346 = vmatprep.subr.bf16.mxu0 0
    %347 = vmatpush1.bf16.msra.mxu0 %v330
    %348 = vmatprep.subr.bf16.mxu0 0
    %349 = vmatpush1.bf16.msra.mxu0 %v331
    %350 = vmatprep.subr.bf16.mxu0 0
    %351 = vmatpush1.bf16.msra.mxu0 %v332
    %352 = vmatprep.subr.bf16.mxu0 0
    %353 = vmatpush1.bf16.msra.mxu0 %v333
    %354 = vmatprep.subr.bf16.mxu0 0
    %355 = vmatpush1.bf16.msra.mxu0 %v334
    %356 = vmatprep.subr.bf16.mxu0 0
    %357 = vmatpush1.bf16.msra.mxu0 %v335
    %358 = vmatprep.subr.bf16.mxu0 0
    %359 = vmatpush1.bf16.msra.mxu0 %v336
    %360 = vmatprep.subr.bf16.mxu0 0
    %361 = vmatpush1.bf16.msra.mxu0 %v337
    %362 = vmatprep.subr.bf16.mxu0 0
    %363 = vmatpush1.bf16.msra.mxu0 0
    %364 = vmatprep.subr.bf16.mxu0 0
    %365 = vmatpush1.bf16.msra.mxu0 0
    %366 = vmatprep.subr.bf16.mxu0 0
    %367 = vmatpush1.bf16.msra.mxu0 0
    %368 = vmatprep.subr.bf16.mxu0 0
    %369 = vmatpush1.bf16.msra.mxu0 0
    %370 = vmatprep.subr.bf16.mxu0 0
    %371 = vmatpush1.bf16.msra.mxu0 0
    %372 = vmatprep.subr.bf16.mxu0 0
    %373 = vmatpush1.bf16.msra.mxu0 0
    %374 = vmatprep.subr.bf16.mxu0 0
    %375 = vmatpush1.bf16.msra.mxu0 0
    %376 = vmatprep.subr.bf16.mxu0 0
    %377 = vmatpush1.bf16.msra.mxu0 0
    %378 = vmatprep.mubr.bf16.mxu0 0
    %379 = vmatmul.mubr.bf16.gmra.mrb[0].mxu0 %v266
    %v380 = vpop.f32.mrb[0].mxu0
    %v381 = vadd.f32 0.0, %v380
    %v382 = vpop.f32.mrb[0].mxu0
    %v383 = vpop.f32.mrb[0].mxu0
    %v384 = vadd.f32 0.0, %v383
    %v385 = vpop.f32.mrb[0].mxu0
    %386 = vmatprep.mubr.bf16.mxu0 0
    %387 = vmatmul.mubr.bf16.gmra.mrb[0].mxu0 %v267
    %v388 = vpop.f32.mrb[0].mxu0
    %v389 = vadd.f32 0.0, %v388
    %v390 = vpop.f32.mrb[0].mxu0
    %v391 = vpop.f32.mrb[0].mxu0
    %v392 = vadd.f32 0.0, %v391
    %v393 = vpop.f32.mrb[0].mxu0
    %394 = vmatprep.mubr.bf16.mxu0 0
    %395 = vmatmul.mubr.bf16.gmra.mrb[0].mxu0 %v268
    %v396 = vpop.f32.mrb[0].mxu0
    %v397 = vadd.f32 0.0, %v396
    %v398 = vpop.f32.mrb[0].mxu0
    %v399 = vpop.f32.mrb[0].mxu0
    %v400 = vadd.f32 0.0, %v399
    %v401 = vpop.f32.mrb[0].mxu0
    %402 = vmatprep.mubr.bf16.mxu0 0
    %403 = vmatmul.mubr.bf16.gmra.mrb[0].mxu0 %v269
    %v404 = vpop.f32.mrb[0].mxu0
    %v405 = vadd.f32 0.0, %v404
    %v406 = vpop.f32.mrb[0].mxu0
    %v407 = vpop.f32.mrb[0].mxu0
    %v408 = vadd.f32 0.0, %v407
    %v409 = vpop.f32.mrb[0].mxu0
    %410 = vmatprep.mubr.bf16.mxu0 0
    %411 = vmatmul.mubr.bf16.gmra.mrb[0].mxu0 %v270
    %v412 = vpop.f32.mrb[0].mxu0
    %v413 = vadd.f32 0.0, %v412
    %v414 = vpop.f32.mrb[0].mxu0
    %v415 = vpop.f32.mrb[0].mxu0
    %v416 = vadd.f32 0.0, %v415
    %v417 = vpop.f32.mrb[0].mxu0
    %418 = vmatprep.mubr.bf16.mxu0 0
    %419 = vmatmul.mubr.bf16.gmra.mrb[0].mxu0 %v271
    %v420 = vpop.f32.mrb[0].mxu0
    %v421 = vadd.f32 0.0, %v420
    %v422 = vpop.f32.mrb[0].mxu0
    %v423 = vpop.f32.mrb[0].mxu0
    %v424 = vadd.f32 0.0, %v423
    %v425 = vpop.f32.mrb[0].mxu0
    %426 = vmatprep.mubr.bf16.mxu0 0
    %427 = vmatmul.mubr.bf16.gmra.mrb[0].mxu0 %v272
    %v428 = vpop.f32.mrb[0].mxu0
    %v429 = vadd.f32 0.0, %v428
    %v430 = vpop.f32.mrb[0].mxu0
    %v431 = vpop.f32.mrb[0].mxu0
    %v432 = vadd.f32 0.0, %v431
    %v433 = vpop.f32.mrb[0].mxu0
    %434 = vmatprep.mubr.bf16.mxu0 0
    %435 = vmatmul.mubr.bf16.gmra.mrb[0].mxu0 %v273
    %v436 = vpop.f32.mrb[0].mxu0
    %v437 = vadd.f32 0.0, %v436
    %v438 = vpop.f32.mrb[0].mxu0
    %v439 = vpop.f32.mrb[0].mxu0
    %v440 = vadd.f32 0.0, %v439
    %v441 = vpop.f32.mrb[0].mxu0
    %442 = vmatprep.mubr.bf16.mxu0 0
    %443 = vmatmul.mubr.bf16.gmra.mrb[0].mxu0 %v274
    %v444 = vpop.f32.mrb[0].mxu0
    %v445 = vadd.f32 0.0, %v444
    %v446 = vpop.f32.mrb[0].mxu0
    %v447 = vpop.f32.mrb[0].mxu0
    %v448 = vadd.f32 0.0, %v447
    %v449 = vpop.f32.mrb[0].mxu0
    %450 = vmatprep.mubr.bf16.mxu0 0
    %451 = vmatmul.mubr.bf16.gmra.mrb[0].mxu0 %v275
    %v452 = vpop.f32.mrb[0].mxu0
    %v453 = vadd.f32 0.0, %v452
    %v454 = vpop.f32.mrb[0].mxu0
    %v455 = vpop.f32.mrb[0].mxu0
    %v456 = vadd.f32 0.0, %v455
    %v457 = vpop.f32.mrb[0].mxu0
    %458 = vmatprep.mubr.bf16.mxu0 0
    %459 = vmatmul.mubr.bf16.gmra.mrb[0].mxu0 %v276
    %v460 = vpop.f32.mrb[0].mxu0
    %v461 = vadd.f32 0.0, %v460
    %v462 = vpop.f32.mrb[0].mxu0
    %v463 = vpop.f32.mrb[0].mxu0
    %v464 = vadd.f32 0.0, %v463
    %v465 = vpop.f32.mrb[0].mxu0
    %466 = vmatprep.mubr.bf16.mxu0 0
    %467 = vmatmul.mubr.bf16.gmra.mrb[0].mxu0 %v277
    %v468 = vpop.f32.mrb[0].mxu0
    %v469 = vadd.f32 0.0, %v468
    %v470 = vpop.f32.mrb[0].mxu0
    %v471 = vpop.f32.mrb[0].mxu0
    %v472 = vadd.f32 0.0, %v471
    %v473 = vpop.f32.mrb[0].mxu0
    %474 = vmatprep.mubr.bf16.mxu0 0
    %475 = vmatmul.mubr.bf16.gmra.mrb[0].mxu0 %v278
    %v476 = vpop.f32.mrb[0].mxu0
    %v477 = vadd.f32 0.0, %v476
    %v478 = vpop.f32.mrb[0].mxu0
    %v479 = vpop.f32.mrb[0].mxu0
    %v480 = vadd.f32 0.0, %v479
    %v481 = vpop.f32.mrb[0].mxu0
    %482 = vmatprep.mubr.bf16.mxu0 0
    %483 = vmatmul.mubr.bf16.gmra.mrb[0].mxu0 %v279
    %v484 = vpop.f32.mrb[0].mxu0
    %v485 = vadd.f32 0.0, %v484
    %v486 = vpop.f32.mrb[0].mxu0
    %v487 = vpop.f32.mrb[0].mxu0
    %v488 = vadd.f32 0.0, %v487
    %v489 = vpop.f32.mrb[0].mxu0
    %490 = vmatprep.mubr.bf16.mxu0 0
    %491 = vmatmul.mubr.bf16.gmra.mrb[0].mxu0 %v280
    %v492 = vpop.f32.mrb[0].mxu0
    %v493 = vadd.f32 0.0, %v492
    %v494 = vpop.f32.mrb[0].mxu0
    %v495 = vpop.f32.mrb[0].mxu0
    %v496 = vadd.f32 0.0, %v495
    %v497 = vpop.f32.mrb[0].mxu0
    %498 = vmatprep.mubr.bf16.mxu0 0
    %499 = vmatmul.mubr.bf16.gmra.mrb[0].mxu0 %v281
    %v500 = vpop.f32.mrb[0].mxu0
    %v501 = vadd.f32 0.0, %v500
    %v502 = vpop.f32.mrb[0].mxu0
    %v503 = vpop.f32.mrb[0].mxu0
    %v504 = vadd.f32 0.0, %v503
    %v505 = vpop.f32.mrb[0].mxu0
    %506 = vdwg.mxu0
    %v507 = vpack.c.bf16 %v384, %v381
    %v508 = vpack.c.bf16 %v392, %v389
    %v509 = vpack.c.bf16 %v400, %v397
    %v510 = vpack.c.bf16 %v408, %v405
    %v511 = vpack.c.bf16 %v416, %v413
    %v512 = vpack.c.bf16 %v424, %v421
    %v513 = vpack.c.bf16 %v432, %v429
    %v514 = vpack.c.bf16 %v440, %v437
    %v515 = vpack.c.bf16 %v448, %v445
    %v516 = vpack.c.bf16 %v456, %v453
    %v517 = vpack.c.bf16 %v464, %v461
    %v518 = vpack.c.bf16 %v472, %v469
    %v519 = vpack.c.bf16 %v480, %v477
    %v520 = vpack.c.bf16 %v488, %v485
    %v521 = vpack.c.bf16 %v496, %v493
    %v522 = vpack.c.bf16 %v504, %v501
    %v523 = vld [vmem:[%s3] sm:$0x1]
    %v525 = vlaneseq
    %v526 = vshrl.u32 %v525, 7
    %v527 = vsub.s32 0, %v526
    %v528 = vrot.slane %v523, %v527
    %v562 = vunpack.c.l.b16 %v122
    %v563 = vunpack.c.h.b16 %v122
    %v564 = vunpack.c.l.b16 %v123
    %v565 = vunpack.c.h.b16 %v123
    %v566 = vunpack.c.l.b16 %v124
    %v567 = vunpack.c.h.b16 %v124
    %v568 = vunpack.c.l.b16 %v125
    %v569 = vunpack.c.h.b16 %v125
    %v570 = vunpack.c.l.b16 %v126
    %v571 = vunpack.c.h.b16 %v126
    %v572 = vunpack.c.l.b16 %v127
    %v573 = vunpack.c.h.b16 %v127
    %v574 = vunpack.c.l.b16 %v128
    %v575 = vunpack.c.h.b16 %v128
    %v576 = vunpack.c.l.b16 %v129
    %v577 = vunpack.c.h.b16 %v129
    %v578 = vunpack.c.l.b16 %v130
    %v579 = vunpack.c.h.b16 %v130
    %v580 = vunpack.c.l.b16 %v131
    %v581 = vunpack.c.h.b16 %v131
    %v582 = vunpack.c.l.b16 %v132
    %v583 = vunpack.c.h.b16 %v132
    %v584 = vunpack.c.l.b16 %v133
    %v585 = vunpack.c.h.b16 %v133
    %v586 = vunpack.c.l.b16 %v134
    %v587 = vunpack.c.h.b16 %v134
    %v588 = vunpack.c.l.b16 %v135
    %v589 = vunpack.c.h.b16 %v135
    %v590 = vunpack.c.l.b16 %v136
    %v591 = vunpack.c.h.b16 %v136
    %v592 = vunpack.c.l.b16 %v137
    %v593 = vunpack.c.h.b16 %v137
    %v594 = vunpack.c.l.b16 %v138
    %v595 = vunpack.c.h.b16 %v138
    %v596 = vunpack.c.l.b16 %v139
    %v597 = vunpack.c.h.b16 %v139
    %v598 = vunpack.c.l.b16 %v140
    %v599 = vunpack.c.h.b16 %v140
    %v600 = vunpack.c.l.b16 %v141
    %v601 = vunpack.c.h.b16 %v141
    %v602 = vunpack.c.l.b16 %v142
    %v603 = vunpack.c.h.b16 %v142
    %v604 = vunpack.c.l.b16 %v143
    %v605 = vunpack.c.h.b16 %v143
    %v606 = vunpack.c.l.b16 %v144
    %v607 = vunpack.c.h.b16 %v144
    %v608 = vunpack.c.l.b16 %v145
    %v609 = vunpack.c.h.b16 %v145
    %v610 = vunpack.c.l.b16 %v146
    %v611 = vunpack.c.h.b16 %v146
    %v612 = vunpack.c.l.b16 %v147
    %v613 = vunpack.c.h.b16 %v147
    %v614 = vunpack.c.l.b16 %v148
    %v615 = vunpack.c.h.b16 %v148
    %v616 = vunpack.c.l.b16 %v149
    %v617 = vunpack.c.h.b16 %v149
    %v618 = vunpack.c.l.b16 %v150
    %v619 = vunpack.c.h.b16 %v150
    %v620 = vunpack.c.l.b16 %v151
    %v621 = vunpack.c.h.b16 %v151
    %v622 = vunpack.c.l.b16 %v152
    %v623 = vunpack.c.h.b16 %v152
    %v624 = vunpack.c.l.b16 %v153
    %v625 = vunpack.c.h.b16 %v153
    %v626 = vpack.c.b16 %v564, %v562
    %v627 = vpack.c.b16 %v565, %v563
    %v628 = vpack.c.b16 %v568, %v566
    %v629 = vpack.c.b16 %v569, %v567
    %v630 = vpack.c.b16 %v572, %v570
    %v631 = vpack.c.b16 %v573, %v571
    %v632 = vpack.c.b16 %v576, %v574
    %v633 = vpack.c.b16 %v577, %v575
    %v634 = vpack.c.b16 %v580, %v578
    %v635 = vpack.c.b16 %v581, %v579
    %v636 = vpack.c.b16 %v584, %v582
    %v637 = vpack.c.b16 %v585, %v583
    %v638 = vpack.c.b16 %v588, %v586
    %v639 = vpack.c.b16 %v589, %v587
    %v640 = vpack.c.b16 %v592, %v590
    %v641 = vpack.c.b16 %v593, %v591
    %v642 = vpack.c.b16 %v596, %v594
    %v643 = vpack.c.b16 %v597, %v595
    %v644 = vpack.c.b16 %v600, %v598
    %v645 = vpack.c.b16 %v601, %v599
    %v646 = vpack.c.b16 %v604, %v602
    %v647 = vpack.c.b16 %v605, %v603
    %v648 = vpack.c.b16 %v608, %v606
    %v649 = vpack.c.b16 %v609, %v607
    %v650 = vpack.c.b16 %v612, %v610
    %v651 = vpack.c.b16 %v613, %v611
    %v652 = vpack.c.b16 %v616, %v614
    %v653 = vpack.c.b16 %v617, %v615
    %v654 = vpack.c.b16 %v620, %v618
    %v655 = vpack.c.b16 %v621, %v619
    %v656 = vpack.c.b16 %v624, %v622
    %v657 = vpack.c.b16 %v625, %v623
    %690 = vmatprep.subr.bf16.mxu0 0
    %691 = vmatpush1.bf16.msra.mxu0 %v507
    %692 = vmatprep.subr.bf16.mxu0 0
    %693 = vmatpush1.bf16.msra.mxu0 %v508
    %694 = vmatprep.subr.bf16.mxu0 0
    %695 = vmatpush1.bf16.msra.mxu0 %v509
    %696 = vmatprep.subr.bf16.mxu0 0
    %697 = vmatpush1.bf16.msra.mxu0 %v510
    %698 = vmatprep.subr.bf16.mxu0 0
    %699 = vmatpush1.bf16.msra.mxu0 %v511
    %700 = vmatprep.subr.bf16.mxu0 0
    %701 = vmatpush1.bf16.msra.mxu0 %v512
    %702 = vmatprep.subr.bf16.mxu0 0
    %703 = vmatpush1.bf16.msra.mxu0 %v513
    %704 = vmatprep.subr.bf16.mxu0 0
    %705 = vmatpush1.bf16.msra.mxu0 %v514
    %706 = vmatprep.subr.bf16.mxu0 0
    %707 = vmatpush1.bf16.msra.mxu0 %v515
    %708 = vmatprep.subr.bf16.mxu0 0
    %709 = vmatpush1.bf16.msra.mxu0 %v516
    %710 = vmatprep.subr.bf16.mxu0 0
    %711 = vmatpush1.bf16.msra.mxu0 %v517
    %712 = vmatprep.subr.bf16.mxu0 0
    %713 = vmatpush1.bf16.msra.mxu0 %v518
    %714 = vmatprep.subr.bf16.mxu0 0
    %715 = vmatpush1.bf16.msra.mxu0 %v519
    %716 = vmatprep.subr.bf16.mxu0 0
    %717 = vmatpush1.bf16.msra.mxu0 %v520
    %718 = vmatprep.subr.bf16.mxu0 0
    %719 = vmatpush1.bf16.msra.mxu0 %v521
    %720 = vmatprep.subr.bf16.mxu0 0
    %721 = vmatpush1.bf16.msra.mxu0 %v522
    %722 = vmatprep.mubr.bf16.mxu0 %v627
    %723 = vmatmul.mubr.bf16.gmra.mrb[0].mxu0 %v626
    %v724 = vpop.f32.mrb[0].mxu0
    %v725 = vadd.f32 %v528, %v724
    %v726 = vpop.f32.mrb[0].mxu0
    %v727 = vpop.f32.mrb[0].mxu0
    %v728 = vadd.f32 %v528, %v727
    %v729 = vpop.f32.mrb[0].mxu0
    %730 = vmatprep.mubr.bf16.mxu0 %v629
    %731 = vmatmul.mubr.bf16.gmra.mrb[0].mxu0 %v628
    %v732 = vpop.f32.mrb[0].mxu0
    %v733 = vadd.f32 %v528, %v732
    %v734 = vpop.f32.mrb[0].mxu0
    %v735 = vpop.f32.mrb[0].mxu0
    %v736 = vadd.f32 %v528, %v735
    %v737 = vpop.f32.mrb[0].mxu0
    %738 = vmatprep.mubr.bf16.mxu0 %v631
    %739 = vmatmul.mubr.bf16.gmra.mrb[0].mxu0 %v630
    %v740 = vpop.f32.mrb[0].mxu0
    %v741 = vadd.f32 %v528, %v740
    %v742 = vpop.f32.mrb[0].mxu0
    %v743 = vpop.f32.mrb[0].mxu0
    %v744 = vadd.f32 %v528, %v743
    %v745 = vpop.f32.mrb[0].mxu0
    %746 = vmatprep.mubr.bf16.mxu0 %v633
    %747 = vmatmul.mubr.bf16.gmra.mrb[0].mxu0 %v632
    %v748 = vpop.f32.mrb[0].mxu0
    %v749 = vadd.f32 %v528, %v748
    %v750 = vpop.f32.mrb[0].mxu0
    %v751 = vpop.f32.mrb[0].mxu0
    %v752 = vadd.f32 %v528, %v751
    %v753 = vpop.f32.mrb[0].mxu0
    %754 = vmatprep.mubr.bf16.mxu0 %v635
    %755 = vmatmul.mubr.bf16.gmra.mrb[0].mxu0 %v634
    %v756 = vpop.f32.mrb[0].mxu0
    %v757 = vadd.f32 %v528, %v756
    %v758 = vpop.f32.mrb[0].mxu0
    %v759 = vpop.f32.mrb[0].mxu0
    %v760 = vadd.f32 %v528, %v759
    %v761 = vpop.f32.mrb[0].mxu0
    %762 = vmatprep.mubr.bf16.mxu0 %v637
    %763 = vmatmul.mubr.bf16.gmra.mrb[0].mxu0 %v636
    %v764 = vpop.f32.mrb[0].mxu0
    %v765 = vadd.f32 %v528, %v764
    %v766 = vpop.f32.mrb[0].mxu0
    %v767 = vpop.f32.mrb[0].mxu0
    %v768 = vadd.f32 %v528, %v767
    %v769 = vpop.f32.mrb[0].mxu0
    %770 = vmatprep.mubr.bf16.mxu0 %v639
    %771 = vmatmul.mubr.bf16.gmra.mrb[0].mxu0 %v638
    %v772 = vpop.f32.mrb[0].mxu0
    %v773 = vadd.f32 %v528, %v772
    %v774 = vpop.f32.mrb[0].mxu0
    %v775 = vpop.f32.mrb[0].mxu0
    %v776 = vadd.f32 %v528, %v775
    %v777 = vpop.f32.mrb[0].mxu0
    %778 = vmatprep.mubr.bf16.mxu0 %v641
    %779 = vmatmul.mubr.bf16.gmra.mrb[0].mxu0 %v640
    %v780 = vpop.f32.mrb[0].mxu0
    %v781 = vadd.f32 %v528, %v780
    %v782 = vpop.f32.mrb[0].mxu0
    %v783 = vpop.f32.mrb[0].mxu0
    %v784 = vadd.f32 %v528, %v783
    %v785 = vpop.f32.mrb[0].mxu0
    %786 = vmatprep.mubr.bf16.mxu0 %v643
    %787 = vmatmul.mubr.bf16.gmra.mrb[0].mxu0 %v642
    %v788 = vpop.f32.mrb[0].mxu0
    %v789 = vadd.f32 %v528, %v788
    %v790 = vpop.f32.mrb[0].mxu0
    %v791 = vpop.f32.mrb[0].mxu0
    %v792 = vadd.f32 %v528, %v791
    %v793 = vpop.f32.mrb[0].mxu0
    %794 = vmatprep.mubr.bf16.mxu0 %v645
    %795 = vmatmul.mubr.bf16.gmra.mrb[0].mxu0 %v644
    %v796 = vpop.f32.mrb[0].mxu0
    %v797 = vadd.f32 %v528, %v796
    %v798 = vpop.f32.mrb[0].mxu0
    %v799 = vpop.f32.mrb[0].mxu0
    %v800 = vadd.f32 %v528, %v799
    %v801 = vpop.f32.mrb[0].mxu0
    %802 = vmatprep.mubr.bf16.mxu0 %v647
    %803 = vmatmul.mubr.bf16.gmra.mrb[0].mxu0 %v646
    %v804 = vpop.f32.mrb[0].mxu0
    %v805 = vadd.f32 %v528, %v804
    %v806 = vpop.f32.mrb[0].mxu0
    %v807 = vpop.f32.mrb[0].mxu0
    %v808 = vadd.f32 %v528, %v807
    %v809 = vpop.f32.mrb[0].mxu0
    %810 = vmatprep.mubr.bf16.mxu0 %v649
    %811 = vmatmul.mubr.bf16.gmra.mrb[0].mxu0 %v648
    %v812 = vpop.f32.mrb[0].mxu0
    %v813 = vadd.f32 %v528, %v812
    %v814 = vpop.f32.mrb[0].mxu0
    %v815 = vpop.f32.mrb[0].mxu0
    %v816 = vadd.f32 %v528, %v815
    %v817 = vpop.f32.mrb[0].mxu0
    %818 = vmatprep.mubr.bf16.mxu0 %v651
    %819 = vmatmul.mubr.bf16.gmra.mrb[0].mxu0 %v650
    %v820 = vpop.f32.mrb[0].mxu0
    %v821 = vadd.f32 %v528, %v820
    %v822 = vpop.f32.mrb[0].mxu0
    %v823 = vpop.f32.mrb[0].mxu0
    %v824 = vadd.f32 %v528, %v823
    %v825 = vpop.f32.mrb[0].mxu0
    %826 = vmatprep.mubr.bf16.mxu0 %v653
    %827 = vmatmul.mubr.bf16.gmra.mrb[0].mxu0 %v652
    %v828 = vpop.f32.mrb[0].mxu0
    %v829 = vadd.f32 %v528, %v828
    %v830 = vpop.f32.mrb[0].mxu0
    %v831 = vpop.f32.mrb[0].mxu0
    %v832 = vadd.f32 %v528, %v831
    %v833 = vpop.f32.mrb[0].mxu0
    %834 = vmatprep.mubr.bf16.mxu0 %v655
    %835 = vmatmul.mubr.bf16.gmra.mrb[0].mxu0 %v654
    %v836 = vpop.f32.mrb[0].mxu0
    %v837 = vadd.f32 %v528, %v836
    %v838 = vpop.f32.mrb[0].mxu0
    %v839 = vpop.f32.mrb[0].mxu0
    %v840 = vadd.f32 %v528, %v839
    %v841 = vpop.f32.mrb[0].mxu0
    %842 = vmatprep.mubr.bf16.mxu0 %v657
    %843 = vmatmul.mubr.bf16.gmra.mrb[0].mxu0 %v656
    %v844 = vpop.f32.mrb[0].mxu0
    %v845 = vadd.f32 %v528, %v844
    %v846 = vpop.f32.mrb[0].mxu0
    %v847 = vpop.f32.mrb[0].mxu0
    %v848 = vadd.f32 %v528, %v847
    %v849 = vpop.f32.mrb[0].mxu0
    %850 = vdwg.mxu0
    %v851 = vmax.f32 %v725, 0.0
    %v852 = vmax.f32 %v728, 0.0
    %v853 = vmax.f32 %v733, 0.0
    %v854 = vmax.f32 %v736, 0.0
    %v855 = vmax.f32 %v741, 0.0
    %v856 = vmax.f32 %v744, 0.0
    %v857 = vmax.f32 %v749, 0.0
    %v858 = vmax.f32 %v752, 0.0
    %v859 = vmax.f32 %v757, 0.0
    %v860 = vmax.f32 %v760, 0.0
    %v861 = vmax.f32 %v765, 0.0
    %v862 = vmax.f32 %v768, 0.0
    %v863 = vmax.f32 %v773, 0.0
    %v864 = vmax.f32 %v776, 0.0
    %v865 = vmax.f32 %v781, 0.0
    %v866 = vmax.f32 %v784, 0.0
    %v867 = vmax.f32 %v789, 0.0
    %v868 = vmax.f32 %v792, 0.0
    %v869 = vmax.f32 %v797, 0.0
    %v870 = vmax.f32 %v800, 0.0
    %v871 = vmax.f32 %v805, 0.0
    %v872 = vmax.f32 %v808, 0.0
    %v873 = vmax.f32 %v813, 0.0
    %v874 = vmax.f32 %v816, 0.0
    %v875 = vmax.f32 %v821, 0.0
    %v876 = vmax.f32 %v824, 0.0
    %v877 = vmax.f32 %v829, 0.0
    %v878 = vmax.f32 %v832, 0.0
    %v879 = vmax.f32 %v837, 0.0
    %v880 = vmax.f32 %v840, 0.0
    %v881 = vmax.f32 %v845, 0.0
    %v882 = vmax.f32 %v848, 0.0
    %v883 = vpack.c.bf16 %v852, %v851
    %v884 = vpack.c.bf16 %v854, %v853
    %v885 = vpack.c.bf16 %v856, %v855
    %v886 = vpack.c.bf16 %v858, %v857
    %v887 = vpack.c.bf16 %v860, %v859
    %v888 = vpack.c.bf16 %v862, %v861
    %v889 = vpack.c.bf16 %v864, %v863
    %v890 = vpack.c.bf16 %v866, %v865
    %v891 = vpack.c.bf16 %v868, %v867
    %v892 = vpack.c.bf16 %v870, %v869
    %v893 = vpack.c.bf16 %v872, %v871
    %v894 = vpack.c.bf16 %v874, %v873
    %v895 = vpack.c.bf16 %v876, %v875
    %v896 = vpack.c.bf16 %v878, %v877
    %v897 = vpack.c.bf16 %v880, %v879
    %v898 = vpack.c.bf16 %v882, %v881
    %v899 = vld [vmem:[#allocation8] sm:$0xf]
    %v900 = vld [vmem:[#allocation8 + $0x4] sm:$0xf]
    %v901 = vld [vmem:[#allocation8 + $0x8] sm:$0xf]
    %v902 = vld [vmem:[#allocation8 + $0xc] sm:$0xf]
    %v903 = vld [vmem:[#allocation8 + $0x10] sm:$0xf]
    %v904 = vld [vmem:[#allocation8 + $0x14] sm:$0xf]
    %v905 = vld [vmem:[#allocation8 + $0x18] sm:$0xf]
    %v906 = vld [vmem:[#allocation8 + $0x1c] sm:$0xf]
    %v907 = vld [vmem:[#allocation8 + $0x20] sm:$0xf]
    %v908 = vld [vmem:[#allocation8 + $0x24] sm:$0xf]
    %v909 = vld [vmem:[#allocation8 + $0x28] sm:$0xf]
    %v910 = vld [vmem:[#allocation8 + $0x2c] sm:$0xf]
    %v911 = vld [vmem:[#allocation8 + $0x30] sm:$0xf]
    %v912 = vld [vmem:[#allocation8 + $0x34] sm:$0xf]
    %v913 = vld [vmem:[#allocation8 + $0x38] sm:$0xf]
    %v914 = vld [vmem:[#allocation8 + $0x3c] sm:$0xf]
    %v931 = vunpack.c.l.b16 %v899
    %v932 = vunpack.c.l.b16 %v900
    %v933 = vunpack.c.l.b16 %v901
    %v934 = vunpack.c.l.b16 %v902
    %v935 = vunpack.c.l.b16 %v903
    %v936 = vunpack.c.l.b16 %v904
    %v937 = vunpack.c.l.b16 %v905
    %v938 = vunpack.c.l.b16 %v906
    %v939 = vunpack.c.l.b16 %v907
    %v940 = vunpack.c.l.b16 %v908
    %v941 = vunpack.c.l.b16 %v909
    %v942 = vunpack.c.l.b16 %v910
    %v943 = vunpack.c.l.b16 %v911
    %v944 = vunpack.c.l.b16 %v912
    %v945 = vunpack.c.l.b16 %v913
    %v946 = vunpack.c.l.b16 %v914
    %v947 = vpack.c.b16 %v932, %v931
    %v948 = vpack.c.b16 %v934, %v933
    %v949 = vpack.c.b16 %v936, %v935
    %v950 = vpack.c.b16 %v938, %v937
    %v951 = vpack.c.b16 %v940, %v939
    %v952 = vpack.c.b16 %v942, %v941
    %v953 = vpack.c.b16 %v944, %v943
    %v954 = vpack.c.b16 %v946, %v945
    %963 = vmatprep.subr.bf16.mxu0 0
    %964 = vmatpush1.bf16.msra.mxu0 %v947
    %965 = vmatprep.subr.bf16.mxu0 0
    %966 = vmatpush1.bf16.msra.mxu0 %v948
    %967 = vmatprep.subr.bf16.mxu0 0
    %968 = vmatpush1.bf16.msra.mxu0 %v949
    %969 = vmatprep.subr.bf16.mxu0 0
    %970 = vmatpush1.bf16.msra.mxu0 %v950
    %971 = vmatprep.subr.bf16.mxu0 0
    %972 = vmatpush1.bf16.msra.mxu0 %v951
    %973 = vmatprep.subr.bf16.mxu0 0
    %974 = vmatpush1.bf16.msra.mxu0 %v952
    %975 = vmatprep.subr.bf16.mxu0 0
    %976 = vmatpush1.bf16.msra.mxu0 %v953
    %977 = vmatprep.subr.bf16.mxu0 0
    %978 = vmatpush1.bf16.msra.mxu0 %v954
    %979 = vmatprep.subr.bf16.mxu0 0
    %980 = vmatpush1.bf16.msra.mxu0 0
    %981 = vmatprep.subr.bf16.mxu0 0
    %982 = vmatpush1.bf16.msra.mxu0 0
    %983 = vmatprep.subr.bf16.mxu0 0
    %984 = vmatpush1.bf16.msra.mxu0 0
    %985 = vmatprep.subr.bf16.mxu0 0
    %986 = vmatpush1.bf16.msra.mxu0 0
    %987 = vmatprep.subr.bf16.mxu0 0
    %988 = vmatpush1.bf16.msra.mxu0 0
    %989 = vmatprep.subr.bf16.mxu0 0
    %990 = vmatpush1.bf16.msra.mxu0 0
    %991 = vmatprep.subr.bf16.mxu0 0
    %992 = vmatpush1.bf16.msra.mxu0 0
    %993 = vmatprep.subr.bf16.mxu0 0
    %994 = vmatpush1.bf16.msra.mxu0 0
    %995 = vmatprep.mubr.bf16.mxu0 0
    %996 = vmatmul.mubr.bf16.gmra.mrb[0].mxu0 %v883
    %v997 = vpop.f32.mrb[0].mxu0
    %v998 = vadd.f32 0.0, %v997
    %v999 = vpop.f32.mrb[0].mxu0
    %v1000 = vpop.f32.mrb[0].mxu0
    %v1001 = vadd.f32 0.0, %v1000
    %v1002 = vpop.f32.mrb[0].mxu0
    %1003 = vmatprep.mubr.bf16.mxu0 0
    %1004 = vmatmul.mubr.bf16.gmra.mrb[0].mxu0 %v884
    %v1005 = vpop.f32.mrb[0].mxu0
    %v1006 = vadd.f32 0.0, %v1005
    %v1007 = vpop.f32.mrb[0].mxu0
    %v1008 = vpop.f32.mrb[0].mxu0
    %v1009 = vadd.f32 0.0, %v1008
    %v1010 = vpop.f32.mrb[0].mxu0
    %1011 = vmatprep.mubr.bf16.mxu0 0
    %1012 = vmatmul.mubr.bf16.gmra.mrb[0].mxu0 %v885
    %v1013 = vpop.f32.mrb[0].mxu0
    %v1014 = vadd.f32 0.0, %v1013
    %v1015 = vpop.f32.mrb[0].mxu0
    %v1016 = vpop.f32.mrb[0].mxu0
    %v1017 = vadd.f32 0.0, %v1016
    %v1018 = vpop.f32.mrb[0].mxu0
    %1019 = vmatprep.mubr.bf16.mxu0 0
    %1020 = vmatmul.mubr.bf16.gmra.mrb[0].mxu0 %v886
    %v1021 = vpop.f32.mrb[0].mxu0
    %v1022 = vadd.f32 0.0, %v1021
    %v1023 = vpop.f32.mrb[0].mxu0
    %v1024 = vpop.f32.mrb[0].mxu0
    %v1025 = vadd.f32 0.0, %v1024
    %v1026 = vpop.f32.mrb[0].mxu0
    %1027 = vmatprep.mubr.bf16.mxu0 0
    %1028 = vmatmul.mubr.bf16.gmra.mrb[0].mxu0 %v887
    %v1029 = vpop.f32.mrb[0].mxu0
    %v1030 = vadd.f32 0.0, %v1029
    %v1031 = vpop.f32.mrb[0].mxu0
    %v1032 = vpop.f32.mrb[0].mxu0
    %v1033 = vadd.f32 0.0, %v1032
    %v1034 = vpop.f32.mrb[0].mxu0
    %1035 = vmatprep.mubr.bf16.mxu0 0
    %1036 = vmatmul.mubr.bf16.gmra.mrb[0].mxu0 %v888
    %v1037 = vpop.f32.mrb[0].mxu0
    %v1038 = vadd.f32 0.0, %v1037
    %v1039 = vpop.f32.mrb[0].mxu0
    %v1040 = vpop.f32.mrb[0].mxu0
    %v1041 = vadd.f32 0.0, %v1040
    %v1042 = vpop.f32.mrb[0].mxu0
    %1043 = vmatprep.mubr.bf16.mxu0 0
    %1044 = vmatmul.mubr.bf16.gmra.mrb[0].mxu0 %v889
    %v1045 = vpop.f32.mrb[0].mxu0
    %v1046 = vadd.f32 0.0, %v1045
    %v1047 = vpop.f32.mrb[0].mxu0
    %v1048 = vpop.f32.mrb[0].mxu0
    %v1049 = vadd.f32 0.0, %v1048
    %v1050 = vpop.f32.mrb[0].mxu0
    %1051 = vmatprep.mubr.bf16.mxu0 0
    %1052 = vmatmul.mubr.bf16.gmra.mrb[0].mxu0 %v890
    %v1053 = vpop.f32.mrb[0].mxu0
    %v1054 = vadd.f32 0.0, %v1053
    %v1055 = vpop.f32.mrb[0].mxu0
    %v1056 = vpop.f32.mrb[0].mxu0
    %v1057 = vadd.f32 0.0, %v1056
    %v1058 = vpop.f32.mrb[0].mxu0
    %1059 = vmatprep.mubr.bf16.mxu0 0
    %1060 = vmatmul.mubr.bf16.gmra.mrb[0].mxu0 %v891
    %v1061 = vpop.f32.mrb[0].mxu0
    %v1062 = vadd.f32 0.0, %v1061
    %v1063 = vpop.f32.mrb[0].mxu0
    %v1064 = vpop.f32.mrb[0].mxu0
    %v1065 = vadd.f32 0.0, %v1064
    %v1066 = vpop.f32.mrb[0].mxu0
    %1067 = vmatprep.mubr.bf16.mxu0 0
    %1068 = vmatmul.mubr.bf16.gmra.mrb[0].mxu0 %v892
    %v1069 = vpop.f32.mrb[0].mxu0
    %v1070 = vadd.f32 0.0, %v1069
    %v1071 = vpop.f32.mrb[0].mxu0
    %v1072 = vpop.f32.mrb[0].mxu0
    %v1073 = vadd.f32 0.0, %v1072
    %v1074 = vpop.f32.mrb[0].mxu0
    %1075 = vmatprep.mubr.bf16.mxu0 0
    %1076 = vmatmul.mubr.bf16.gmra.mrb[0].mxu0 %v893
    %v1077 = vpop.f32.mrb[0].mxu0
    %v1078 = vadd.f32 0.0, %v1077
    %v1079 = vpop.f32.mrb[0].mxu0
    %v1080 = vpop.f32.mrb[0].mxu0
    %v1081 = vadd.f32 0.0, %v1080
    %v1082 = vpop.f32.mrb[0].mxu0
    %1083 = vmatprep.mubr.bf16.mxu0 0
    %1084 = vmatmul.mubr.bf16.gmra.mrb[0].mxu0 %v894
    %v1085 = vpop.f32.mrb[0].mxu0
    %v1086 = vadd.f32 0.0, %v1085
    %v1087 = vpop.f32.mrb[0].mxu0
    %v1088 = vpop.f32.mrb[0].mxu0
    %v1089 = vadd.f32 0.0, %v1088
    %v1090 = vpop.f32.mrb[0].mxu0
    %1091 = vmatprep.mubr.bf16.mxu0 0
    %1092 = vmatmul.mubr.bf16.gmra.mrb[0].mxu0 %v895
    %v1093 = vpop.f32.mrb[0].mxu0
    %v1094 = vadd.f32 0.0, %v1093
    %v1095 = vpop.f32.mrb[0].mxu0
    %v1096 = vpop.f32.mrb[0].mxu0
    %v1097 = vadd.f32 0.0, %v1096
    %v1098 = vpop.f32.mrb[0].mxu0
    %1099 = vmatprep.mubr.bf16.mxu0 0
    %1100 = vmatmul.mubr.bf16.gmra.mrb[0].mxu0 %v896
    %v1101 = vpop.f32.mrb[0].mxu0
    %v1102 = vadd.f32 0.0, %v1101
    %v1103 = vpop.f32.mrb[0].mxu0
    %v1104 = vpop.f32.mrb[0].mxu0
    %v1105 = vadd.f32 0.0, %v1104
    %v1106 = vpop.f32.mrb[0].mxu0
    %1107 = vmatprep.mubr.bf16.mxu0 0
    %1108 = vmatmul.mubr.bf16.gmra.mrb[0].mxu0 %v897
    %v1109 = vpop.f32.mrb[0].mxu0
    %v1110 = vadd.f32 0.0, %v1109
    %v1111 = vpop.f32.mrb[0].mxu0
    %v1112 = vpop.f32.mrb[0].mxu0
    %v1113 = vadd.f32 0.0, %v1112
    %v1114 = vpop.f32.mrb[0].mxu0
    %1115 = vmatprep.mubr.bf16.mxu0 0
    %1116 = vmatmul.mubr.bf16.gmra.mrb[0].mxu0 %v898
    %v1117 = vpop.f32.mrb[0].mxu0
    %v1118 = vadd.f32 0.0, %v1117
    %v1119 = vpop.f32.mrb[0].mxu0
    %v1120 = vpop.f32.mrb[0].mxu0
    %v1121 = vadd.f32 0.0, %v1120
    %v1122 = vpop.f32.mrb[0].mxu0
    %1123 = vdwg.mxu0
    %v1124 = vpack.c.bf16 %v1001, %v998
    %v1125 = vpack.c.bf16 %v1009, %v1006
    %v1126 = vpack.c.bf16 %v1017, %v1014
    %v1127 = vpack.c.bf16 %v1025, %v1022
    %v1128 = vpack.c.bf16 %v1033, %v1030
    %v1129 = vpack.c.bf16 %v1041, %v1038
    %v1130 = vpack.c.bf16 %v1049, %v1046
    %v1131 = vpack.c.bf16 %v1057, %v1054
    %v1132 = vpack.c.bf16 %v1065, %v1062
    %v1133 = vpack.c.bf16 %v1073, %v1070
    %v1134 = vpack.c.bf16 %v1081, %v1078
    %v1135 = vpack.c.bf16 %v1089, %v1086
    %v1136 = vpack.c.bf16 %v1097, %v1094
    %v1137 = vpack.c.bf16 %v1105, %v1102
    %v1138 = vpack.c.bf16 %v1113, %v1110
    %v1139 = vpack.c.bf16 %v1121, %v1118
    %v1140 = vld [vmem:[%s5] sm:$0x1]
    %v1142 = vlaneseq
    %v1143 = vshrl.u32 %v1142, 7
    %v1144 = vsub.s32 0, %v1143
    %v1145 = vrot.slane %v1140, %v1144
    %1147 = vmatprep.subr.bf16.mxu0 0
    %1148 = vmatpush1.bf16.msra.mxu0 %v1124
    %1149 = vmatprep.subr.bf16.mxu0 0
    %1150 = vmatpush1.bf16.msra.mxu0 %v1125
    %1151 = vmatprep.subr.bf16.mxu0 0
    %1152 = vmatpush1.bf16.msra.mxu0 %v1126
    %1153 = vmatprep.subr.bf16.mxu0 0
    %1154 = vmatpush1.bf16.msra.mxu0 %v1127
    %1155 = vmatprep.subr.bf16.mxu0 0
    %1156 = vmatpush1.bf16.msra.mxu0 %v1128
    %1157 = vmatprep.subr.bf16.mxu0 0
    %1158 = vmatpush1.bf16.msra.mxu0 %v1129
    %1159 = vmatprep.subr.bf16.mxu0 0
    %1160 = vmatpush1.bf16.msra.mxu0 %v1130
    %1161 = vmatprep.subr.bf16.mxu0 0
    %1162 = vmatpush1.bf16.msra.mxu0 %v1131
    %1163 = vmatprep.subr.bf16.mxu0 0
    %1164 = vmatpush1.bf16.msra.mxu0 %v1132
    %1165 = vmatprep.subr.bf16.mxu0 0
    %1166 = vmatpush1.bf16.msra.mxu0 %v1133
    %1167 = vmatprep.subr.bf16.mxu0 0
    %1168 = vmatpush1.bf16.msra.mxu0 %v1134
    %1169 = vmatprep.subr.bf16.mxu0 0
    %1170 = vmatpush1.bf16.msra.mxu0 %v1135
    %1171 = vmatprep.subr.bf16.mxu0 0
    %1172 = vmatpush1.bf16.msra.mxu0 %v1136
    %1173 = vmatprep.subr.bf16.mxu0 0
    %1174 = vmatpush1.bf16.msra.mxu0 %v1137
    %1175 = vmatprep.subr.bf16.mxu0 0
    %1176 = vmatpush1.bf16.msra.mxu0 %v1138
    %1177 = vmatprep.subr.bf16.mxu0 0
    %1178 = vmatpush1.bf16.msra.mxu0 %v1139
    %1179 = vmatprep.mubr.bf16.mxu0 %v627
    %1180 = vmatmul.mubr.bf16.gmra.mrb[0].mxu0 %v626
    %v1181 = vpop.f32.mrb[0].mxu0
    %v1182 = vadd.f32 %v1145, %v1181
    %v1183 = vpop.f32.mrb[0].mxu0
    %v1184 = vpop.f32.mrb[0].mxu0
    %v1185 = vadd.f32 %v1145, %v1184
    %v1186 = vpop.f32.mrb[0].mxu0
    %1187 = vmatprep.mubr.bf16.mxu0 %v629
    %1188 = vmatmul.mubr.bf16.gmra.mrb[0].mxu0 %v628
    %v1189 = vpop.f32.mrb[0].mxu0
    %v1190 = vadd.f32 %v1145, %v1189
    %v1191 = vpop.f32.mrb[0].mxu0
    %v1192 = vpop.f32.mrb[0].mxu0
    %v1193 = vadd.f32 %v1145, %v1192
    %v1194 = vpop.f32.mrb[0].mxu0
    %1195 = vmatprep.mubr.bf16.mxu0 %v631
    %1196 = vmatmul.mubr.bf16.gmra.mrb[0].mxu0 %v630
    %v1197 = vpop.f32.mrb[0].mxu0
    %v1198 = vadd.f32 %v1145, %v1197
    %v1199 = vpop.f32.mrb[0].mxu0
    %v1200 = vpop.f32.mrb[0].mxu0
    %v1201 = vadd.f32 %v1145, %v1200
    %v1202 = vpop.f32.mrb[0].mxu0
    %1203 = vmatprep.mubr.bf16.mxu0 %v633
    %1204 = vmatmul.mubr.bf16.gmra.mrb[0].mxu0 %v632
    %v1205 = vpop.f32.mrb[0].mxu0
    %v1206 = vadd.f32 %v1145, %v1205
    %v1207 = vpop.f32.mrb[0].mxu0
    %v1208 = vpop.f32.mrb[0].mxu0
    %v1209 = vadd.f32 %v1145, %v1208
    %v1210 = vpop.f32.mrb[0].mxu0
    %1211 = vmatprep.mubr.bf16.mxu0 %v635
    %1212 = vmatmul.mubr.bf16.gmra.mrb[0].mxu0 %v634
    %v1213 = vpop.f32.mrb[0].mxu0
    %v1214 = vadd.f32 %v1145, %v1213
    %v1215 = vpop.f32.mrb[0].mxu0
    %v1216 = vpop.f32.mrb[0].mxu0
    %v1217 = vadd.f32 %v1145, %v1216
    %v1218 = vpop.f32.mrb[0].mxu0
    %1219 = vmatprep.mubr.bf16.mxu0 %v637
    %1220 = vmatmul.mubr.bf16.gmra.mrb[0].mxu0 %v636
    %v1221 = vpop.f32.mrb[0].mxu0
    %v1222 = vadd.f32 %v1145, %v1221
    %v1223 = vpop.f32.mrb[0].mxu0
    %v1224 = vpop.f32.mrb[0].mxu0
    %v1225 = vadd.f32 %v1145, %v1224
    %v1226 = vpop.f32.mrb[0].mxu0
    %1227 = vmatprep.mubr.bf16.mxu0 %v639
    %1228 = vmatmul.mubr.bf16.gmra.mrb[0].mxu0 %v638
    %v1229 = vpop.f32.mrb[0].mxu0
    %v1230 = vadd.f32 %v1145, %v1229
    %v1231 = vpop.f32.mrb[0].mxu0
    %v1232 = vpop.f32.mrb[0].mxu0
    %v1233 = vadd.f32 %v1145, %v1232
    %v1234 = vpop.f32.mrb[0].mxu0
    %1235 = vmatprep.mubr.bf16.mxu0 %v641
    %1236 = vmatmul.mubr.bf16.gmra.mrb[0].mxu0 %v640
    %v1237 = vpop.f32.mrb[0].mxu0
    %v1238 = vadd.f32 %v1145, %v1237
    %v1239 = vpop.f32.mrb[0].mxu0
    %v1240 = vpop.f32.mrb[0].mxu0
    %v1241 = vadd.f32 %v1145, %v1240
    %v1242 = vpop.f32.mrb[0].mxu0
    %1243 = vmatprep.mubr.bf16.mxu0 %v643
    %1244 = vmatmul.mubr.bf16.gmra.mrb[0].mxu0 %v642
    %v1245 = vpop.f32.mrb[0].mxu0
    %v1246 = vadd.f32 %v1145, %v1245
    %v1247 = vpop.f32.mrb[0].mxu0
    %v1248 = vpop.f32.mrb[0].mxu0
    %v1249 = vadd.f32 %v1145, %v1248
    %v1250 = vpop.f32.mrb[0].mxu0
    %1251 = vmatprep.mubr.bf16.mxu0 %v645
    %1252 = vmatmul.mubr.bf16.gmra.mrb[0].mxu0 %v644
    %v1253 = vpop.f32.mrb[0].mxu0
    %v1254 = vadd.f32 %v1145, %v1253
    %v1255 = vpop.f32.mrb[0].mxu0
    %v1256 = vpop.f32.mrb[0].mxu0
    %v1257 = vadd.f32 %v1145, %v1256
    %v1258 = vpop.f32.mrb[0].mxu0
    %1259 = vmatprep.mubr.bf16.mxu0 %v647
    %1260 = vmatmul.mubr.bf16.gmra.mrb[0].mxu0 %v646
    %v1261 = vpop.f32.mrb[0].mxu0
    %v1262 = vadd.f32 %v1145, %v1261
    %v1263 = vpop.f32.mrb[0].mxu0
    %v1264 = vpop.f32.mrb[0].mxu0
    %v1265 = vadd.f32 %v1145, %v1264
    %v1266 = vpop.f32.mrb[0].mxu0
    %1267 = vmatprep.mubr.bf16.mxu0 %v649
    %1268 = vmatmul.mubr.bf16.gmra.mrb[0].mxu0 %v648
    %v1269 = vpop.f32.mrb[0].mxu0
    %v1270 = vadd.f32 %v1145, %v1269
    %v1271 = vpop.f32.mrb[0].mxu0
    %v1272 = vpop.f32.mrb[0].mxu0
    %v1273 = vadd.f32 %v1145, %v1272
    %v1274 = vpop.f32.mrb[0].mxu0
    %1275 = vmatprep.mubr.bf16.mxu0 %v651
    %1276 = vmatmul.mubr.bf16.gmra.mrb[0].mxu0 %v650
    %v1277 = vpop.f32.mrb[0].mxu0
    %v1278 = vadd.f32 %v1145, %v1277
    %v1279 = vpop.f32.mrb[0].mxu0
    %v1280 = vpop.f32.mrb[0].mxu0
    %v1281 = vadd.f32 %v1145, %v1280
    %v1282 = vpop.f32.mrb[0].mxu0
    %1283 = vmatprep.mubr.bf16.mxu0 %v653
    %1284 = vmatmul.mubr.bf16.gmra.mrb[0].mxu0 %v652
    %v1285 = vpop.f32.mrb[0].mxu0
    %v1286 = vadd.f32 %v1145, %v1285
    %v1287 = vpop.f32.mrb[0].mxu0
    %v1288 = vpop.f32.mrb[0].mxu0
    %v1289 = vadd.f32 %v1145, %v1288
    %v1290 = vpop.f32.mrb[0].mxu0
    %1291 = vmatprep.mubr.bf16.mxu0 %v655
    %1292 = vmatmul.mubr.bf16.gmra.mrb[0].mxu0 %v654
    %v1293 = vpop.f32.mrb[0].mxu0
    %v1294 = vadd.f32 %v1145, %v1293
    %v1295 = vpop.f32.mrb[0].mxu0
    %v1296 = vpop.f32.mrb[0].mxu0
    %v1297 = vadd.f32 %v1145, %v1296
    %v1298 = vpop.f32.mrb[0].mxu0
    %1299 = vmatprep.mubr.bf16.mxu0 %v657
    %1300 = vmatmul.mubr.bf16.gmra.mrb[0].mxu0 %v656
    %v1301 = vpop.f32.mrb[0].mxu0
    %v1302 = vadd.f32 %v1145, %v1301
    %v1303 = vpop.f32.mrb[0].mxu0
    %v1304 = vpop.f32.mrb[0].mxu0
    %v1305 = vadd.f32 %v1145, %v1304
    %v1306 = vpop.f32.mrb[0].mxu0
    %1307 = vdwg.mxu0
    %v1308 = vmax.f32 %v1182, 0.0
    %v1309 = vmax.f32 %v1185, 0.0
    %v1310 = vmax.f32 %v1190, 0.0
    %v1311 = vmax.f32 %v1193, 0.0
    %v1312 = vmax.f32 %v1198, 0.0
    %v1313 = vmax.f32 %v1201, 0.0
    %v1314 = vmax.f32 %v1206, 0.0
    %v1315 = vmax.f32 %v1209, 0.0
    %v1316 = vmax.f32 %v1214, 0.0
    %v1317 = vmax.f32 %v1217, 0.0
    %v1318 = vmax.f32 %v1222, 0.0
    %v1319 = vmax.f32 %v1225, 0.0
    %v1320 = vmax.f32 %v1230, 0.0
    %v1321 = vmax.f32 %v1233, 0.0
    %v1322 = vmax.f32 %v1238, 0.0
    %v1323 = vmax.f32 %v1241, 0.0
    %v1324 = vmax.f32 %v1246, 0.0
    %v1325 = vmax.f32 %v1249, 0.0
    %v1326 = vmax.f32 %v1254, 0.0
    %v1327 = vmax.f32 %v1257, 0.0
    %v1328 = vmax.f32 %v1262, 0.0
    %v1329 = vmax.f32 %v1265, 0.0
    %v1330 = vmax.f32 %v1270, 0.0
    %v1331 = vmax.f32 %v1273, 0.0
    %v1332 = vmax.f32 %v1278, 0.0
    %v1333 = vmax.f32 %v1281, 0.0
    %v1334 = vmax.f32 %v1286, 0.0
    %v1335 = vmax.f32 %v1289, 0.0
    %v1336 = vmax.f32 %v1294, 0.0
    %v1337 = vmax.f32 %v1297, 0.0
    %v1338 = vmax.f32 %v1302, 0.0
    %v1339 = vmax.f32 %v1305, 0.0
    %1340 = vst [vmem:[#allocation13] sm:$0xff] %v1308
    %1341 = vst [vmem:[#allocation13 + $0x8] sm:$0xff] %v1309
    %1342 = vst [vmem:[#allocation13 + $0x10] sm:$0xff] %v1310
    %1343 = vst [vmem:[#allocation13 + $0x18] sm:$0xff] %v1311
    %1344 = vst [vmem:[#allocation13 + $0x20] sm:$0xff] %v1312
    %1345 = vst [vmem:[#allocation13 + $0x28] sm:$0xff] %v1313
    %1346 = vst [vmem:[#allocation13 + $0x30] sm:$0xff] %v1314
    %1347 = vst [vmem:[#allocation13 + $0x38] sm:$0xff] %v1315
    %1348 = vst [vmem:[#allocation13 + $0x40] sm:$0xff] %v1316
    %1349 = vst [vmem:[#allocation13 + $0x48] sm:$0xff] %v1317
    %1350 = vst [vmem:[#allocation13 + $0x50] sm:$0xff] %v1318
    %1351 = vst [vmem:[#allocation13 + $0x58] sm:$0xff] %v1319
    %1352 = vst [vmem:[#allocation13 + $0x60] sm:$0xff] %v1320
    %1353 = vst [vmem:[#allocation13 + $0x68] sm:$0xff] %v1321
    %1354 = vst [vmem:[#allocation13 + $0x70] sm:$0xff] %v1322
    %1355 = vst [vmem:[#allocation13 + $0x78] sm:$0xff] %v1323
    %1356 = vst [vmem:[#allocation13 + $0x80] sm:$0xff] %v1324
    %1357 = vst [vmem:[#allocation13 + $0x88] sm:$0xff] %v1325
    %1358 = vst [vmem:[#allocation13 + $0x90] sm:$0xff] %v1326
    %1359 = vst [vmem:[#allocation13 + $0x98] sm:$0xff] %v1327
    %1360 = vst [vmem:[#allocation13 + $0xa0] sm:$0xff] %v1328
    %1361 = vst [vmem:[#allocation13 + $0xa8] sm:$0xff] %v1329
    %1362 = vst [vmem:[#allocation13 + $0xb0] sm:$0xff] %v1330
    %1363 = vst [vmem:[#allocation13 + $0xb8] sm:$0xff] %v1331
    %1364 = vst [vmem:[#allocation13 + $0xc0] sm:$0xff] %v1332
    %1365 = vst [vmem:[#allocation13 + $0xc8] sm:$0xff] %v1333
    %1366 = vst [vmem:[#allocation13 + $0xd0] sm:$0xff] %v1334
    %1367 = vst [vmem:[#allocation13 + $0xd8] sm:$0xff] %v1335
    %1368 = vst [vmem:[#allocation13 + $0xe0] sm:$0xff] %v1336
    %1369 = vst [vmem:[#allocation13 + $0xe8] sm:$0xff] %v1337
    %1370 = vst [vmem:[#allocation13 + $0xf0] sm:$0xff] %v1338
    %1371 = vst [vmem:[#allocation13 + $0xf8] sm:$0xff] %v1339
    %v1372 = vpack.c.bf16 %v1309, %v1308
    %v1373 = vpack.c.bf16 %v1311, %v1310
    %v1374 = vpack.c.bf16 %v1313, %v1312
    %v1375 = vpack.c.bf16 %v1315, %v1314
    %v1376 = vpack.c.bf16 %v1317, %v1316
    %v1377 = vpack.c.bf16 %v1319, %v1318
    %v1378 = vpack.c.bf16 %v1321, %v1320
    %v1379 = vpack.c.bf16 %v1323, %v1322
    %v1380 = vpack.c.bf16 %v1325, %v1324
    %v1381 = vpack.c.bf16 %v1327, %v1326
    %v1382 = vpack.c.bf16 %v1329, %v1328
    %v1383 = vpack.c.bf16 %v1331, %v1330
    %v1384 = vpack.c.bf16 %v1333, %v1332
    %v1385 = vpack.c.bf16 %v1335, %v1334
    %v1386 = vpack.c.bf16 %v1337, %v1336
    %v1387 = vpack.c.bf16 %v1339, %v1338
    %v1388 = vld [vmem:[#allocation10] sm:$0xf]
    %v1389 = vld [vmem:[#allocation10 + $0x4] sm:$0xf]
    %v1390 = vld [vmem:[#allocation10 + $0x8] sm:$0xf]
    %v1391 = vld [vmem:[#allocation10 + $0xc] sm:$0xf]
    %v1392 = vld [vmem:[#allocation10 + $0x10] sm:$0xf]
    %v1393 = vld [vmem:[#allocation10 + $0x14] sm:$0xf]
    %v1394 = vld [vmem:[#allocation10 + $0x18] sm:$0xf]
    %v1395 = vld [vmem:[#allocation10 + $0x1c] sm:$0xf]
    %v1396 = vld [vmem:[#allocation10 + $0x20] sm:$0xf]
    %v1397 = vld [vmem:[#allocation10 + $0x24] sm:$0xf]
    %v1398 = vld [vmem:[#allocation10 + $0x28] sm:$0xf]
    %v1399 = vld [vmem:[#allocation10 + $0x2c] sm:$0xf]
    %v1400 = vld [vmem:[#allocation10 + $0x30] sm:$0xf]
    %v1401 = vld [vmem:[#allocation10 + $0x34] sm:$0xf]
    %v1402 = vld [vmem:[#allocation10 + $0x38] sm:$0xf]
    %v1403 = vld [vmem:[#allocation10 + $0x3c] sm:$0xf]
    %v1420 = vunpack.c.l.b16 %v1388
    %v1421 = vunpack.c.l.b16 %v1389
    %v1422 = vunpack.c.l.b16 %v1390
    %v1423 = vunpack.c.l.b16 %v1391
    %v1424 = vunpack.c.l.b16 %v1392
    %v1425 = vunpack.c.l.b16 %v1393
    %v1426 = vunpack.c.l.b16 %v1394
    %v1427 = vunpack.c.l.b16 %v1395
    %v1428 = vunpack.c.l.b16 %v1396
    %v1429 = vunpack.c.l.b16 %v1397
    %v1430 = vunpack.c.l.b16 %v1398
    %v1431 = vunpack.c.l.b16 %v1399
    %v1432 = vunpack.c.l.b16 %v1400
    %v1433 = vunpack.c.l.b16 %v1401
    %v1434 = vunpack.c.l.b16 %v1402
    %v1435 = vunpack.c.l.b16 %v1403
    %v1436 = vpack.c.b16 %v1421, %v1420
    %v1437 = vpack.c.b16 %v1423, %v1422
    %v1438 = vpack.c.b16 %v1425, %v1424
    %v1439 = vpack.c.b16 %v1427, %v1426
    %v1440 = vpack.c.b16 %v1429, %v1428
    %v1441 = vpack.c.b16 %v1431, %v1430
    %v1442 = vpack.c.b16 %v1433, %v1432
    %v1443 = vpack.c.b16 %v1435, %v1434
    %1452 = vmatprep.subr.bf16.mxu0 0
    %1453 = vmatpush1.bf16.msra.mxu0 %v1436
    %1454 = vmatprep.subr.bf16.mxu0 0
    %1455 = vmatpush1.bf16.msra.mxu0 %v1437
    %1456 = vmatprep.subr.bf16.mxu0 0
    %1457 = vmatpush1.bf16.msra.mxu0 %v1438
    %1458 = vmatprep.subr.bf16.mxu0 0
    %1459 = vmatpush1.bf16.msra.mxu0 %v1439
    %1460 = vmatprep.subr.bf16.mxu0 0
    %1461 = vmatpush1.bf16.msra.mxu0 %v1440
    %1462 = vmatprep.subr.bf16.mxu0 0
    %1463 = vmatpush1.bf16.msra.mxu0 %v1441
    %1464 = vmatprep.subr.bf16.mxu0 0
    %1465 = vmatpush1.bf16.msra.mxu0 %v1442
    %1466 = vmatprep.subr.bf16.mxu0 0
    %1467 = vmatpush1.bf16.msra.mxu0 %v1443
    %1468 = vmatprep.subr.bf16.mxu0 0
    %1469 = vmatpush1.bf16.msra.mxu0 0
    %1470 = vmatprep.subr.bf16.mxu0 0
    %1471 = vmatpush1.bf16.msra.mxu0 0
    %1472 = vmatprep.subr.bf16.mxu0 0
    %1473 = vmatpush1.bf16.msra.mxu0 0
    %1474 = vmatprep.subr.bf16.mxu0 0
    %1475 = vmatpush1.bf16.msra.mxu0 0
    %1476 = vmatprep.subr.bf16.mxu0 0
    %1477 = vmatpush1.bf16.msra.mxu0 0
    %1478 = vmatprep.subr.bf16.mxu0 0
    %1479 = vmatpush1.bf16.msra.mxu0 0
    %1480 = vmatprep.subr.bf16.mxu0 0
    %1481 = vmatpush1.bf16.msra.mxu0 0
    %1482 = vmatprep.subr.bf16.mxu0 0
    %1483 = vmatpush1.bf16.msra.mxu0 0
    %1484 = vmatprep.mubr.bf16.mxu0 0
    %1485 = vmatmul.mubr.bf16.gmra.mrb[0].mxu0 %v1372
    %v1486 = vpop.f32.mrb[0].mxu0
    %v1487 = vadd.f32 0.0, %v1486
    %v1488 = vpop.f32.mrb[0].mxu0
    %v1489 = vpop.f32.mrb[0].mxu0
    %v1490 = vadd.f32 0.0, %v1489
    %v1491 = vpop.f32.mrb[0].mxu0
    %1492 = vmatprep.mubr.bf16.mxu0 0
    %1493 = vmatmul.mubr.bf16.gmra.mrb[0].mxu0 %v1373
    %v1494 = vpop.f32.mrb[0].mxu0
    %v1495 = vadd.f32 0.0, %v1494
    %v1496 = vpop.f32.mrb[0].mxu0
    %v1497 = vpop.f32.mrb[0].mxu0
    %v1498 = vadd.f32 0.0, %v1497
    %v1499 = vpop.f32.mrb[0].mxu0
    %1500 = vmatprep.mubr.bf16.mxu0 0
    %1501 = vmatmul.mubr.bf16.gmra.mrb[0].mxu0 %v1374
    %v1502 = vpop.f32.mrb[0].mxu0
    %v1503 = vadd.f32 0.0, %v1502
    %v1504 = vpop.f32.mrb[0].mxu0
    %v1505 = vpop.f32.mrb[0].mxu0
    %v1506 = vadd.f32 0.0, %v1505
    %v1507 = vpop.f32.mrb[0].mxu0
    %1508 = vmatprep.mubr.bf16.mxu0 0
    %1509 = vmatmul.mubr.bf16.gmra.mrb[0].mxu0 %v1375
    %v1510 = vpop.f32.mrb[0].mxu0
    %v1511 = vadd.f32 0.0, %v1510
    %v1512 = vpop.f32.mrb[0].mxu0
    %v1513 = vpop.f32.mrb[0].mxu0
    %v1514 = vadd.f32 0.0, %v1513
    %v1515 = vpop.f32.mrb[0].mxu0
    %1516 = vmatprep.mubr.bf16.mxu0 0
    %1517 = vmatmul.mubr.bf16.gmra.mrb[0].mxu0 %v1376
    %v1518 = vpop.f32.mrb[0].mxu0
    %v1519 = vadd.f32 0.0, %v1518
    %v1520 = vpop.f32.mrb[0].mxu0
    %v1521 = vpop.f32.mrb[0].mxu0
    %v1522 = vadd.f32 0.0, %v1521
    %v1523 = vpop.f32.mrb[0].mxu0
    %1524 = vmatprep.mubr.bf16.mxu0 0
    %1525 = vmatmul.mubr.bf16.gmra.mrb[0].mxu0 %v1377
    %v1526 = vpop.f32.mrb[0].mxu0
    %v1527 = vadd.f32 0.0, %v1526
    %v1528 = vpop.f32.mrb[0].mxu0
    %v1529 = vpop.f32.mrb[0].mxu0
    %v1530 = vadd.f32 0.0, %v1529
    %v1531 = vpop.f32.mrb[0].mxu0
    %1532 = vmatprep.mubr.bf16.mxu0 0
    %1533 = vmatmul.mubr.bf16.gmra.mrb[0].mxu0 %v1378
    %v1534 = vpop.f32.mrb[0].mxu0
    %v1535 = vadd.f32 0.0, %v1534
    %v1536 = vpop.f32.mrb[0].mxu0
    %v1537 = vpop.f32.mrb[0].mxu0
    %v1538 = vadd.f32 0.0, %v1537
    %v1539 = vpop.f32.mrb[0].mxu0
    %1540 = vmatprep.mubr.bf16.mxu0 0
    %1541 = vmatmul.mubr.bf16.gmra.mrb[0].mxu0 %v1379
    %v1542 = vpop.f32.mrb[0].mxu0
    %v1543 = vadd.f32 0.0, %v1542
    %v1544 = vpop.f32.mrb[0].mxu0
    %v1545 = vpop.f32.mrb[0].mxu0
    %v1546 = vadd.f32 0.0, %v1545
    %v1547 = vpop.f32.mrb[0].mxu0
    %1548 = vmatprep.mubr.bf16.mxu0 0
    %1549 = vmatmul.mubr.bf16.gmra.mrb[0].mxu0 %v1380
    %v1550 = vpop.f32.mrb[0].mxu0
    %v1551 = vadd.f32 0.0, %v1550
    %v1552 = vpop.f32.mrb[0].mxu0
    %v1553 = vpop.f32.mrb[0].mxu0
    %v1554 = vadd.f32 0.0, %v1553
    %v1555 = vpop.f32.mrb[0].mxu0
    %1556 = vmatprep.mubr.bf16.mxu0 0
    %1557 = vmatmul.mubr.bf16.gmra.mrb[0].mxu0 %v1381
    %v1558 = vpop.f32.mrb[0].mxu0
    %v1559 = vadd.f32 0.0, %v1558
    %v1560 = vpop.f32.mrb[0].mxu0
    %v1561 = vpop.f32.mrb[0].mxu0
    %v1562 = vadd.f32 0.0, %v1561
    %v1563 = vpop.f32.mrb[0].mxu0
    %1564 = vmatprep.mubr.bf16.mxu0 0
    %1565 = vmatmul.mubr.bf16.gmra.mrb[0].mxu0 %v1382
    %v1566 = vpop.f32.mrb[0].mxu0
    %v1567 = vadd.f32 0.0, %v1566
    %v1568 = vpop.f32.mrb[0].mxu0
    %v1569 = vpop.f32.mrb[0].mxu0
    %v1570 = vadd.f32 0.0, %v1569
    %v1571 = vpop.f32.mrb[0].mxu0
    %1572 = vmatprep.mubr.bf16.mxu0 0
    %1573 = vmatmul.mubr.bf16.gmra.mrb[0].mxu0 %v1383
    %v1574 = vpop.f32.mrb[0].mxu0
    %v1575 = vadd.f32 0.0, %v1574
    %v1576 = vpop.f32.mrb[0].mxu0
    %v1577 = vpop.f32.mrb[0].mxu0
    %v1578 = vadd.f32 0.0, %v1577
    %v1579 = vpop.f32.mrb[0].mxu0
    %1580 = vmatprep.mubr.bf16.mxu0 0
    %1581 = vmatmul.mubr.bf16.gmra.mrb[0].mxu0 %v1384
    %v1582 = vpop.f32.mrb[0].mxu0
    %v1583 = vadd.f32 0.0, %v1582
    %v1584 = vpop.f32.mrb[0].mxu0
    %v1585 = vpop.f32.mrb[0].mxu0
    %v1586 = vadd.f32 0.0, %v1585
    %v1587 = vpop.f32.mrb[0].mxu0
    %1588 = vmatprep.mubr.bf16.mxu0 0
    %1589 = vmatmul.mubr.bf16.gmra.mrb[0].mxu0 %v1385
    %v1590 = vpop.f32.mrb[0].mxu0
    %v1591 = vadd.f32 0.0, %v1590
    %v1592 = vpop.f32.mrb[0].mxu0
    %v1593 = vpop.f32.mrb[0].mxu0
    %v1594 = vadd.f32 0.0, %v1593
    %v1595 = vpop.f32.mrb[0].mxu0
    %1596 = vmatprep.mubr.bf16.mxu0 0
    %1597 = vmatmul.mubr.bf16.gmra.mrb[0].mxu0 %v1386
    %v1598 = vpop.f32.mrb[0].mxu0
    %v1599 = vadd.f32 0.0, %v1598
    %v1600 = vpop.f32.mrb[0].mxu0
    %v1601 = vpop.f32.mrb[0].mxu0
    %v1602 = vadd.f32 0.0, %v1601
    %v1603 = vpop.f32.mrb[0].mxu0
    %1604 = vmatprep.mubr.bf16.mxu0 0
    %1605 = vmatmul.mubr.bf16.gmra.mrb[0].mxu0 %v1387
    %v1606 = vpop.f32.mrb[0].mxu0
    %v1607 = vadd.f32 0.0, %v1606
    %v1608 = vpop.f32.mrb[0].mxu0
    %v1609 = vpop.f32.mrb[0].mxu0
    %v1610 = vadd.f32 0.0, %v1609
    %v1611 = vpop.f32.mrb[0].mxu0
    %1612 = vdwg.mxu0
    %v1613 = vpack.c.bf16 %v1490, %v1487
    %v1614 = vpack.c.bf16 %v1498, %v1495
    %v1615 = vpack.c.bf16 %v1506, %v1503
    %v1616 = vpack.c.bf16 %v1514, %v1511
    %v1617 = vpack.c.bf16 %v1522, %v1519
    %v1618 = vpack.c.bf16 %v1530, %v1527
    %v1619 = vpack.c.bf16 %v1538, %v1535
    %v1620 = vpack.c.bf16 %v1546, %v1543
    %v1621 = vpack.c.bf16 %v1554, %v1551
    %v1622 = vpack.c.bf16 %v1562, %v1559
    %v1623 = vpack.c.bf16 %v1570, %v1567
    %v1624 = vpack.c.bf16 %v1578, %v1575
    %v1625 = vpack.c.bf16 %v1586, %v1583
    %v1626 = vpack.c.bf16 %v1594, %v1591
    %v1627 = vpack.c.bf16 %v1602, %v1599
    %v1628 = vpack.c.bf16 %v1610, %v1607
    %v1629 = vld [vmem:[%s7] sm:$0x1]
    %v1631 = vlaneseq
    %v1632 = vshrl.u32 %v1631, 7
    %v1633 = vsub.s32 0, %v1632
    %v1634 = vrot.slane %v1629, %v1633
    %1636 = vmatprep.subr.bf16.mxu0 0
    %1637 = vmatpush1.bf16.msra.mxu0 %v1613
    %1638 = vmatprep.subr.bf16.mxu0 0
    %1639 = vmatpush1.bf16.msra.mxu0 %v1614
    %1640 = vmatprep.subr.bf16.mxu0 0
    %1641 = vmatpush1.bf16.msra.mxu0 %v1615
    %1642 = vmatprep.subr.bf16.mxu0 0
    %1643 = vmatpush1.bf16.msra.mxu0 %v1616
    %1644 = vmatprep.subr.bf16.mxu0 0
    %1645 = vmatpush1.bf16.msra.mxu0 %v1617
    %1646 = vmatprep.subr.bf16.mxu0 0
    %1647 = vmatpush1.bf16.msra.mxu0 %v1618
    %1648 = vmatprep.subr.bf16.mxu0 0
    %1649 = vmatpush1.bf16.msra.mxu0 %v1619
    %1650 = vmatprep.subr.bf16.mxu0 0
    %1651 = vmatpush1.bf16.msra.mxu0 %v1620
    %1652 = vmatprep.subr.bf16.mxu0 0
    %1653 = vmatpush1.bf16.msra.mxu0 %v1621
    %1654 = vmatprep.subr.bf16.mxu0 0
    %1655 = vmatpush1.bf16.msra.mxu0 %v1622
    %1656 = vmatprep.subr.bf16.mxu0 0
    %1657 = vmatpush1.bf16.msra.mxu0 %v1623
    %1658 = vmatprep.subr.bf16.mxu0 0
    %1659 = vmatpush1.bf16.msra.mxu0 %v1624
    %1660 = vmatprep.subr.bf16.mxu0 0
    %1661 = vmatpush1.bf16.msra.mxu0 %v1625
    %1662 = vmatprep.subr.bf16.mxu0 0
    %1663 = vmatpush1.bf16.msra.mxu0 %v1626
    %1664 = vmatprep.subr.bf16.mxu0 0
    %1665 = vmatpush1.bf16.msra.mxu0 %v1627
    %1666 = vmatprep.subr.bf16.mxu0 0
    %1667 = vmatpush1.bf16.msra.mxu0 %v1628
    %1668 = vmatprep.mubr.bf16.mxu0 %v627
    %1669 = vmatmul.mubr.bf16.gmra.mrb[0].mxu0 %v626
    %v1670 = vpop.f32.mrb[0].mxu0
    %v1671 = vadd.f32 %v1634, %v1670
    %v1672 = vpop.f32.mrb[0].mxu0
    %v1673 = vpop.f32.mrb[0].mxu0
    %v1674 = vadd.f32 %v1634, %v1673
    %v1675 = vpop.f32.mrb[0].mxu0
    %1676 = vmatprep.mubr.bf16.mxu0 %v629
    %1677 = vmatmul.mubr.bf16.gmra.mrb[0].mxu0 %v628
    %v1678 = vpop.f32.mrb[0].mxu0
    %v1679 = vadd.f32 %v1634, %v1678
    %v1680 = vpop.f32.mrb[0].mxu0
    %v1681 = vpop.f32.mrb[0].mxu0
    %v1682 = vadd.f32 %v1634, %v1681
    %v1683 = vpop.f32.mrb[0].mxu0
    %1684 = vmatprep.mubr.bf16.mxu0 %v631
    %1685 = vmatmul.mubr.bf16.gmra.mrb[0].mxu0 %v630
    %v1686 = vpop.f32.mrb[0].mxu0
    %v1687 = vadd.f32 %v1634, %v1686
    %v1688 = vpop.f32.mrb[0].mxu0
    %v1689 = vpop.f32.mrb[0].mxu0
    %v1690 = vadd.f32 %v1634, %v1689
    %v1691 = vpop.f32.mrb[0].mxu0
    %1692 = vmatprep.mubr.bf16.mxu0 %v633
    %1693 = vmatmul.mubr.bf16.gmra.mrb[0].mxu0 %v632
    %v1694 = vpop.f32.mrb[0].mxu0
    %v1695 = vadd.f32 %v1634, %v1694
    %v1696 = vpop.f32.mrb[0].mxu0
    %v1697 = vpop.f32.mrb[0].mxu0
    %v1698 = vadd.f32 %v1634, %v1697
    %v1699 = vpop.f32.mrb[0].mxu0
    %1700 = vmatprep.mubr.bf16.mxu0 %v635
    %1701 = vmatmul.mubr.bf16.gmra.mrb[0].mxu0 %v634
    %v1702 = vpop.f32.mrb[0].mxu0
    %v1703 = vadd.f32 %v1634, %v1702
    %v1704 = vpop.f32.mrb[0].mxu0
    %v1705 = vpop.f32.mrb[0].mxu0
    %v1706 = vadd.f32 %v1634, %v1705
    %v1707 = vpop.f32.mrb[0].mxu0
    %1708 = vmatprep.mubr.bf16.mxu0 %v637
    %1709 = vmatmul.mubr.bf16.gmra.mrb[0].mxu0 %v636
    %v1710 = vpop.f32.mrb[0].mxu0
    %v1711 = vadd.f32 %v1634, %v1710
    %v1712 = vpop.f32.mrb[0].mxu0
    %v1713 = vpop.f32.mrb[0].mxu0
    %v1714 = vadd.f32 %v1634, %v1713
    %v1715 = vpop.f32.mrb[0].mxu0
    %1716 = vmatprep.mubr.bf16.mxu0 %v639
    %1717 = vmatmul.mubr.bf16.gmra.mrb[0].mxu0 %v638
    %v1718 = vpop.f32.mrb[0].mxu0
    %v1719 = vadd.f32 %v1634, %v1718
    %v1720 = vpop.f32.mrb[0].mxu0
    %v1721 = vpop.f32.mrb[0].mxu0
    %v1722 = vadd.f32 %v1634, %v1721
    %v1723 = vpop.f32.mrb[0].mxu0
    %1724 = vmatprep.mubr.bf16.mxu0 %v641
    %1725 = vmatmul.mubr.bf16.gmra.mrb[0].mxu0 %v640
    %v1726 = vpop.f32.mrb[0].mxu0
    %v1727 = vadd.f32 %v1634, %v1726
    %v1728 = vpop.f32.mrb[0].mxu0
    %v1729 = vpop.f32.mrb[0].mxu0
    %v1730 = vadd.f32 %v1634, %v1729
    %v1731 = vpop.f32.mrb[0].mxu0
    %1732 = vmatprep.mubr.bf16.mxu0 %v643
    %1733 = vmatmul.mubr.bf16.gmra.mrb[0].mxu0 %v642
    %v1734 = vpop.f32.mrb[0].mxu0
    %v1735 = vadd.f32 %v1634, %v1734
    %v1736 = vpop.f32.mrb[0].mxu0
    %v1737 = vpop.f32.mrb[0].mxu0
    %v1738 = vadd.f32 %v1634, %v1737
    %v1739 = vpop.f32.mrb[0].mxu0
    %1740 = vmatprep.mubr.bf16.mxu0 %v645
    %1741 = vmatmul.mubr.bf16.gmra.mrb[0].mxu0 %v644
    %v1742 = vpop.f32.mrb[0].mxu0
    %v1743 = vadd.f32 %v1634, %v1742
    %v1744 = vpop.f32.mrb[0].mxu0
    %v1745 = vpop.f32.mrb[0].mxu0
    %v1746 = vadd.f32 %v1634, %v1745
    %v1747 = vpop.f32.mrb[0].mxu0
    %1748 = vmatprep.mubr.bf16.mxu0 %v647
    %1749 = vmatmul.mubr.bf16.gmra.mrb[0].mxu0 %v646
    %v1750 = vpop.f32.mrb[0].mxu0
    %v1751 = vadd.f32 %v1634, %v1750
    %v1752 = vpop.f32.mrb[0].mxu0
    %v1753 = vpop.f32.mrb[0].mxu0
    %v1754 = vadd.f32 %v1634, %v1753
    %v1755 = vpop.f32.mrb[0].mxu0
    %1756 = vmatprep.mubr.bf16.mxu0 %v649
    %1757 = vmatmul.mubr.bf16.gmra.mrb[0].mxu0 %v648
    %v1758 = vpop.f32.mrb[0].mxu0
    %v1759 = vadd.f32 %v1634, %v1758
    %v1760 = vpop.f32.mrb[0].mxu0
    %v1761 = vpop.f32.mrb[0].mxu0
    %v1762 = vadd.f32 %v1634, %v1761
    %v1763 = vpop.f32.mrb[0].mxu0
    %1764 = vmatprep.mubr.bf16.mxu0 %v651
    %1765 = vmatmul.mubr.bf16.gmra.mrb[0].mxu0 %v650
    %v1766 = vpop.f32.mrb[0].mxu0
    %v1767 = vadd.f32 %v1634, %v1766
    %v1768 = vpop.f32.mrb[0].mxu0
    %v1769 = vpop.f32.mrb[0].mxu0
    %v1770 = vadd.f32 %v1634, %v1769
    %v1771 = vpop.f32.mrb[0].mxu0
    %1772 = vmatprep.mubr.bf16.mxu0 %v653
    %1773 = vmatmul.mubr.bf16.gmra.mrb[0].mxu0 %v652
    %v1774 = vpop.f32.mrb[0].mxu0
    %v1775 = vadd.f32 %v1634, %v1774
    %v1776 = vpop.f32.mrb[0].mxu0
    %v1777 = vpop.f32.mrb[0].mxu0
    %v1778 = vadd.f32 %v1634, %v1777
    %v1779 = vpop.f32.mrb[0].mxu0
    %1780 = vmatprep.mubr.bf16.mxu0 %v655
    %1781 = vmatmul.mubr.bf16.gmra.mrb[0].mxu0 %v654
    %v1782 = vpop.f32.mrb[0].mxu0
    %v1783 = vadd.f32 %v1634, %v1782
    %v1784 = vpop.f32.mrb[0].mxu0
    %v1785 = vpop.f32.mrb[0].mxu0
    %v1786 = vadd.f32 %v1634, %v1785
    %v1787 = vpop.f32.mrb[0].mxu0
    %1788 = vmatprep.mubr.bf16.mxu0 %v657
    %1789 = vmatmul.mubr.bf16.gmra.mrb[0].mxu0 %v656
    %v1790 = vpop.f32.mrb[0].mxu0
    %v1791 = vadd.f32 %v1634, %v1790
    %v1792 = vpop.f32.mrb[0].mxu0
    %v1793 = vpop.f32.mrb[0].mxu0
    %v1794 = vadd.f32 %v1634, %v1793
    %v1795 = vpop.f32.mrb[0].mxu0
    %1796 = vdwg.mxu0
    %v1797 = vmax.f32 %v1671, 0.0
    %v1798 = vmax.f32 %v1674, 0.0
    %v1799 = vmax.f32 %v1679, 0.0
    %v1800 = vmax.f32 %v1682, 0.0
    %v1801 = vmax.f32 %v1687, 0.0
    %v1802 = vmax.f32 %v1690, 0.0
    %v1803 = vmax.f32 %v1695, 0.0
    %v1804 = vmax.f32 %v1698, 0.0
    %v1805 = vmax.f32 %v1703, 0.0
    %v1806 = vmax.f32 %v1706, 0.0
    %v1807 = vmax.f32 %v1711, 0.0
    %v1808 = vmax.f32 %v1714, 0.0
    %v1809 = vmax.f32 %v1719, 0.0
    %v1810 = vmax.f32 %v1722, 0.0
    %v1811 = vmax.f32 %v1727, 0.0
    %v1812 = vmax.f32 %v1730, 0.0
    %v1813 = vmax.f32 %v1735, 0.0
    %v1814 = vmax.f32 %v1738, 0.0
    %v1815 = vmax.f32 %v1743, 0.0
    %v1816 = vmax.f32 %v1746, 0.0
    %v1817 = vmax.f32 %v1751, 0.0
    %v1818 = vmax.f32 %v1754, 0.0
    %v1819 = vmax.f32 %v1759, 0.0
    %v1820 = vmax.f32 %v1762, 0.0
    %v1821 = vmax.f32 %v1767, 0.0
    %v1822 = vmax.f32 %v1770, 0.0
    %v1823 = vmax.f32 %v1775, 0.0
    %v1824 = vmax.f32 %v1778, 0.0
    %v1825 = vmax.f32 %v1783, 0.0
    %v1826 = vmax.f32 %v1786, 0.0
    %v1827 = vmax.f32 %v1791, 0.0
    %v1828 = vmax.f32 %v1794, 0.0
    %v1829 = vpack.c.bf16 %v1798, %v1797
    %v1830 = vpack.c.bf16 %v1800, %v1799
    %v1831 = vpack.c.bf16 %v1802, %v1801
    %v1832 = vpack.c.bf16 %v1804, %v1803
    %v1833 = vpack.c.bf16 %v1806, %v1805
    %v1834 = vpack.c.bf16 %v1808, %v1807
    %v1835 = vpack.c.bf16 %v1810, %v1809
    %v1836 = vpack.c.bf16 %v1812, %v1811
    %v1837 = vpack.c.bf16 %v1814, %v1813
    %v1838 = vpack.c.bf16 %v1816, %v1815
    %v1839 = vpack.c.bf16 %v1818, %v1817
    %v1840 = vpack.c.bf16 %v1820, %v1819
    %v1841 = vpack.c.bf16 %v1822, %v1821
    %v1842 = vpack.c.bf16 %v1824, %v1823
    %v1843 = vpack.c.bf16 %v1826, %v1825
    %v1844 = vpack.c.bf16 %v1828, %v1827
    %v1845 = vld [vmem:[#allocation11] sm:$0xf]
    %v1846 = vld [vmem:[#allocation11 + $0x4] sm:$0xf]
    %v1847 = vld [vmem:[#allocation11 + $0x8] sm:$0xf]
    %v1848 = vld [vmem:[#allocation11 + $0xc] sm:$0xf]
    %v1849 = vld [vmem:[#allocation11 + $0x10] sm:$0xf]
    %v1850 = vld [vmem:[#allocation11 + $0x14] sm:$0xf]
    %v1851 = vld [vmem:[#allocation11 + $0x18] sm:$0xf]
    %v1852 = vld [vmem:[#allocation11 + $0x1c] sm:$0xf]
    %v1853 = vld [vmem:[#allocation11 + $0x20] sm:$0xf]
    %v1854 = vld [vmem:[#allocation11 + $0x24] sm:$0xf]
    %v1855 = vld [vmem:[#allocation11 + $0x28] sm:$0xf]
    %v1856 = vld [vmem:[#allocation11 + $0x2c] sm:$0xf]
    %v1857 = vld [vmem:[#allocation11 + $0x30] sm:$0xf]
    %v1858 = vld [vmem:[#allocation11 + $0x34] sm:$0xf]
    %v1859 = vld [vmem:[#allocation11 + $0x38] sm:$0xf]
    %v1860 = vld [vmem:[#allocation11 + $0x3c] sm:$0xf]
    %v1877 = vunpack.c.l.b16 %v1845
    %v1878 = vunpack.c.l.b16 %v1846
    %v1879 = vunpack.c.l.b16 %v1847
    %v1880 = vunpack.c.l.b16 %v1848
    %v1881 = vunpack.c.l.b16 %v1849
    %v1882 = vunpack.c.l.b16 %v1850
    %v1883 = vunpack.c.l.b16 %v1851
    %v1884 = vunpack.c.l.b16 %v1852
    %v1885 = vunpack.c.l.b16 %v1853
    %v1886 = vunpack.c.l.b16 %v1854
    %v1887 = vunpack.c.l.b16 %v1855
    %v1888 = vunpack.c.l.b16 %v1856
    %v1889 = vunpack.c.l.b16 %v1857
    %v1890 = vunpack.c.l.b16 %v1858
    %v1891 = vunpack.c.l.b16 %v1859
    %v1892 = vunpack.c.l.b16 %v1860
    %v1893 = vpack.c.b16 %v1878, %v1877
    %v1894 = vpack.c.b16 %v1880, %v1879
    %v1895 = vpack.c.b16 %v1882, %v1881
    %v1896 = vpack.c.b16 %v1884, %v1883
    %v1897 = vpack.c.b16 %v1886, %v1885
    %v1898 = vpack.c.b16 %v1888, %v1887
    %v1899 = vpack.c.b16 %v1890, %v1889
    %v1900 = vpack.c.b16 %v1892, %v1891
    %1909 = vmatprep.subr.bf16.mxu0 0
    %1910 = vmatpush1.bf16.msra.mxu0 %v1893
    %1911 = vmatprep.subr.bf16.mxu0 0
    %1912 = vmatpush1.bf16.msra.mxu0 %v1894
    %1913 = vmatprep.subr.bf16.mxu0 0
    %1914 = vmatpush1.bf16.msra.mxu0 %v1895
    %1915 = vmatprep.subr.bf16.mxu0 0
    %1916 = vmatpush1.bf16.msra.mxu0 %v1896
    %1917 = vmatprep.subr.bf16.mxu0 0
    %1918 = vmatpush1.bf16.msra.mxu0 %v1897
    %1919 = vmatprep.subr.bf16.mxu0 0
    %1920 = vmatpush1.bf16.msra.mxu0 %v1898
    %1921 = vmatprep.subr.bf16.mxu0 0
    %1922 = vmatpush1.bf16.msra.mxu0 %v1899
    %1923 = vmatprep.subr.bf16.mxu0 0
    %1924 = vmatpush1.bf16.msra.mxu0 %v1900
    %1925 = vmatprep.subr.bf16.mxu0 0
    %1926 = vmatpush1.bf16.msra.mxu0 0
    %1927 = vmatprep.subr.bf16.mxu0 0
    %1928 = vmatpush1.bf16.msra.mxu0 0
    %1929 = vmatprep.subr.bf16.mxu0 0
    %1930 = vmatpush1.bf16.msra.mxu0 0
    %1931 = vmatprep.subr.bf16.mxu0 0
    %1932 = vmatpush1.bf16.msra.mxu0 0
    %1933 = vmatprep.subr.bf16.mxu0 0
    %1934 = vmatpush1.bf16.msra.mxu0 0
    %1935 = vmatprep.subr.bf16.mxu0 0
    %1936 = vmatpush1.bf16.msra.mxu0 0
    %1937 = vmatprep.subr.bf16.mxu0 0
    %1938 = vmatpush1.bf16.msra.mxu0 0
    %1939 = vmatprep.subr.bf16.mxu0 0
    %1940 = vmatpush1.bf16.msra.mxu0 0
    %1941 = vmatprep.mubr.bf16.mxu0 0
    %1942 = vmatmul.mubr.bf16.gmra.mrb[0].mxu0 %v1829
    %v1943 = vpop.f32.mrb[0].mxu0
    %v1944 = vadd.f32 0.0, %v1943
    %v1945 = vpop.f32.mrb[0].mxu0
    %v1946 = vpop.f32.mrb[0].mxu0
    %v1947 = vadd.f32 0.0, %v1946
    %v1948 = vpop.f32.mrb[0].mxu0
    %1949 = vmatprep.mubr.bf16.mxu0 0
    %1950 = vmatmul.mubr.bf16.gmra.mrb[0].mxu0 %v1830
    %v1951 = vpop.f32.mrb[0].mxu0
    %v1952 = vadd.f32 0.0, %v1951
    %v1953 = vpop.f32.mrb[0].mxu0
    %v1954 = vpop.f32.mrb[0].mxu0
    %v1955 = vadd.f32 0.0, %v1954
    %v1956 = vpop.f32.mrb[0].mxu0
    %1957 = vmatprep.mubr.bf16.mxu0 0
    %1958 = vmatmul.mubr.bf16.gmra.mrb[0].mxu0 %v1831
    %v1959 = vpop.f32.mrb[0].mxu0
    %v1960 = vadd.f32 0.0, %v1959
    %v1961 = vpop.f32.mrb[0].mxu0
    %v1962 = vpop.f32.mrb[0].mxu0
    %v1963 = vadd.f32 0.0, %v1962
    %v1964 = vpop.f32.mrb[0].mxu0
    %1965 = vmatprep.mubr.bf16.mxu0 0
    %1966 = vmatmul.mubr.bf16.gmra.mrb[0].mxu0 %v1832
    %v1967 = vpop.f32.mrb[0].mxu0
    %v1968 = vadd.f32 0.0, %v1967
    %v1969 = vpop.f32.mrb[0].mxu0
    %v1970 = vpop.f32.mrb[0].mxu0
    %v1971 = vadd.f32 0.0, %v1970
    %v1972 = vpop.f32.mrb[0].mxu0
    %1973 = vmatprep.mubr.bf16.mxu0 0
    %1974 = vmatmul.mubr.bf16.gmra.mrb[0].mxu0 %v1833
    %v1975 = vpop.f32.mrb[0].mxu0
    %v1976 = vadd.f32 0.0, %v1975
    %v1977 = vpop.f32.mrb[0].mxu0
    %v1978 = vpop.f32.mrb[0].mxu0
    %v1979 = vadd.f32 0.0, %v1978
    %v1980 = vpop.f32.mrb[0].mxu0
    %1981 = vmatprep.mubr.bf16.mxu0 0
    %1982 = vmatmul.mubr.bf16.gmra.mrb[0].mxu0 %v1834
    %v1983 = vpop.f32.mrb[0].mxu0
    %v1984 = vadd.f32 0.0, %v1983
    %v1985 = vpop.f32.mrb[0].mxu0
    %v1986 = vpop.f32.mrb[0].mxu0
    %v1987 = vadd.f32 0.0, %v1986
    %v1988 = vpop.f32.mrb[0].mxu0
    %1989 = vmatprep.mubr.bf16.mxu0 0
    %1990 = vmatmul.mubr.bf16.gmra.mrb[0].mxu0 %v1835
    %v1991 = vpop.f32.mrb[0].mxu0
    %v1992 = vadd.f32 0.0, %v1991
    %v1993 = vpop.f32.mrb[0].mxu0
    %v1994 = vpop.f32.mrb[0].mxu0
    %v1995 = vadd.f32 0.0, %v1994
    %v1996 = vpop.f32.mrb[0].mxu0
    %1997 = vmatprep.mubr.bf16.mxu0 0
    %1998 = vmatmul.mubr.bf16.gmra.mrb[0].mxu0 %v1836
    %v1999 = vpop.f32.mrb[0].mxu0
    %v2000 = vadd.f32 0.0, %v1999
    %v2001 = vpop.f32.mrb[0].mxu0
    %v2002 = vpop.f32.mrb[0].mxu0
    %v2003 = vadd.f32 0.0, %v2002
    %v2004 = vpop.f32.mrb[0].mxu0
    %2005 = vmatprep.mubr.bf16.mxu0 0
    %2006 = vmatmul.mubr.bf16.gmra.mrb[0].mxu0 %v1837
    %v2007 = vpop.f32.mrb[0].mxu0
    %v2008 = vadd.f32 0.0, %v2007
    %v2009 = vpop.f32.mrb[0].mxu0
    %v2010 = vpop.f32.mrb[0].mxu0
    %v2011 = vadd.f32 0.0, %v2010
    %v2012 = vpop.f32.mrb[0].mxu0
    %2013 = vmatprep.mubr.bf16.mxu0 0
    %2014 = vmatmul.mubr.bf16.gmra.mrb[0].mxu0 %v1838
    %v2015 = vpop.f32.mrb[0].mxu0
    %v2016 = vadd.f32 0.0, %v2015
    %v2017 = vpop.f32.mrb[0].mxu0
    %v2018 = vpop.f32.mrb[0].mxu0
    %v2019 = vadd.f32 0.0, %v2018
    %v2020 = vpop.f32.mrb[0].mxu0
    %2021 = vmatprep.mubr.bf16.mxu0 0
    %2022 = vmatmul.mubr.bf16.gmra.mrb[0].mxu0 %v1839
    %v2023 = vpop.f32.mrb[0].mxu0
    %v2024 = vadd.f32 0.0, %v2023
    %v2025 = vpop.f32.mrb[0].mxu0
    %v2026 = vpop.f32.mrb[0].mxu0
    %v2027 = vadd.f32 0.0, %v2026
    %v2028 = vpop.f32.mrb[0].mxu0
    %2029 = vmatprep.mubr.bf16.mxu0 0
    %2030 = vmatmul.mubr.bf16.gmra.mrb[0].mxu0 %v1840
    %v2031 = vpop.f32.mrb[0].mxu0
    %v2032 = vadd.f32 0.0, %v2031
    %v2033 = vpop.f32.mrb[0].mxu0
    %v2034 = vpop.f32.mrb[0].mxu0
    %v2035 = vadd.f32 0.0, %v2034
    %v2036 = vpop.f32.mrb[0].mxu0
    %2037 = vmatprep.mubr.bf16.mxu0 0
    %2038 = vmatmul.mubr.bf16.gmra.mrb[0].mxu0 %v1841
    %v2039 = vpop.f32.mrb[0].mxu0
    %v2040 = vadd.f32 0.0, %v2039
    %v2041 = vpop.f32.mrb[0].mxu0
    %v2042 = vpop.f32.mrb[0].mxu0
    %v2043 = vadd.f32 0.0, %v2042
    %v2044 = vpop.f32.mrb[0].mxu0
    %2045 = vmatprep.mubr.bf16.mxu0 0
    %2046 = vmatmul.mubr.bf16.gmra.mrb[0].mxu0 %v1842
    %v2047 = vpop.f32.mrb[0].mxu0
    %v2048 = vadd.f32 0.0, %v2047
    %v2049 = vpop.f32.mrb[0].mxu0
    %v2050 = vpop.f32.mrb[0].mxu0
    %v2051 = vadd.f32 0.0, %v2050
    %v2052 = vpop.f32.mrb[0].mxu0
    %2053 = vmatprep.mubr.bf16.mxu0 0
    %2054 = vmatmul.mubr.bf16.gmra.mrb[0].mxu0 %v1843
    %v2055 = vpop.f32.mrb[0].mxu0
    %v2056 = vadd.f32 0.0, %v2055
    %v2057 = vpop.f32.mrb[0].mxu0
    %v2058 = vpop.f32.mrb[0].mxu0
    %v2059 = vadd.f32 0.0, %v2058
    %v2060 = vpop.f32.mrb[0].mxu0
    %2061 = vmatprep.mubr.bf16.mxu0 0
    %2062 = vmatmul.mubr.bf16.gmra.mrb[0].mxu0 %v1844
    %v2063 = vpop.f32.mrb[0].mxu0
    %v2064 = vadd.f32 0.0, %v2063
    %v2065 = vpop.f32.mrb[0].mxu0
    %v2066 = vpop.f32.mrb[0].mxu0
    %v2067 = vadd.f32 0.0, %v2066
    %v2068 = vpop.f32.mrb[0].mxu0
    %2069 = vdwg.mxu0
    %v2070 = vpack.c.bf16 %v1947, %v1944
    %v2071 = vpack.c.bf16 %v1955, %v1952
    %v2072 = vpack.c.bf16 %v1963, %v1960
    %v2073 = vpack.c.bf16 %v1971, %v1968
    %v2074 = vpack.c.bf16 %v1979, %v1976
    %v2075 = vpack.c.bf16 %v1987, %v1984
    %v2076 = vpack.c.bf16 %v1995, %v1992
    %v2077 = vpack.c.bf16 %v2003, %v2000
    %v2078 = vpack.c.bf16 %v2011, %v2008
    %v2079 = vpack.c.bf16 %v2019, %v2016
    %v2080 = vpack.c.bf16 %v2027, %v2024
    %v2081 = vpack.c.bf16 %v2035, %v2032
    %v2082 = vpack.c.bf16 %v2043, %v2040
    %v2083 = vpack.c.bf16 %v2051, %v2048
    %v2084 = vpack.c.bf16 %v2059, %v2056
    %v2085 = vpack.c.bf16 %v2067, %v2064
    %v2086 = vld [vmem:[%s9] sm:$0x1]
    %v2088 = vlaneseq
    %v2089 = vshrl.u32 %v2088, 7
    %v2090 = vsub.s32 0, %v2089
    %v2091 = vrot.slane %v2086, %v2090
    %2093 = vmatprep.subr.bf16.mxu0 0
    %2094 = vmatpush1.bf16.msra.mxu0 %v2070
    %2095 = vmatprep.subr.bf16.mxu0 0
    %2096 = vmatpush1.bf16.msra.mxu0 %v2071
    %2097 = vmatprep.subr.bf16.mxu0 0
    %2098 = vmatpush1.bf16.msra.mxu0 %v2072
    %2099 = vmatprep.subr.bf16.mxu0 0
    %2100 = vmatpush1.bf16.msra.mxu0 %v2073
    %2101 = vmatprep.subr.bf16.mxu0 0
    %2102 = vmatpush1.bf16.msra.mxu0 %v2074
    %2103 = vmatprep.subr.bf16.mxu0 0
    %2104 = vmatpush1.bf16.msra.mxu0 %v2075
    %2105 = vmatprep.subr.bf16.mxu0 0
    %2106 = vmatpush1.bf16.msra.mxu0 %v2076
    %2107 = vmatprep.subr.bf16.mxu0 0
    %2108 = vmatpush1.bf16.msra.mxu0 %v2077
    %2109 = vmatprep.subr.bf16.mxu0 0
    %2110 = vmatpush1.bf16.msra.mxu0 %v2078
    %2111 = vmatprep.subr.bf16.mxu0 0
    %2112 = vmatpush1.bf16.msra.mxu0 %v2079
    %2113 = vmatprep.subr.bf16.mxu0 0
    %2114 = vmatpush1.bf16.msra.mxu0 %v2080
    %2115 = vmatprep.subr.bf16.mxu0 0
    %2116 = vmatpush1.bf16.msra.mxu0 %v2081
    %2117 = vmatprep.subr.bf16.mxu0 0
    %2118 = vmatpush1.bf16.msra.mxu0 %v2082
    %2119 = vmatprep.subr.bf16.mxu0 0
    %2120 = vmatpush1.bf16.msra.mxu0 %v2083
    %2121 = vmatprep.subr.bf16.mxu0 0
    %2122 = vmatpush1.bf16.msra.mxu0 %v2084
    %2123 = vmatprep.subr.bf16.mxu0 0
    %2124 = vmatpush1.bf16.msra.mxu0 %v2085
    %2125 = vmatprep.mubr.bf16.mxu0 %v627
    %2126 = vmatmul.mubr.bf16.gmra.mrb[0].mxu0 %v626
    %v2127 = vpop.f32.mrb[0].mxu0
    %v2128 = vadd.f32 %v2091, %v2127
    %v2129 = vpop.f32.mrb[0].mxu0
    %v2130 = vpop.f32.mrb[0].mxu0
    %v2131 = vadd.f32 %v2091, %v2130
    %v2132 = vpop.f32.mrb[0].mxu0
    %2133 = vmatprep.mubr.bf16.mxu0 %v629
    %2134 = vmatmul.mubr.bf16.gmra.mrb[0].mxu0 %v628
    %v2135 = vpop.f32.mrb[0].mxu0
    %v2136 = vadd.f32 %v2091, %v2135
    %v2137 = vpop.f32.mrb[0].mxu0
    %v2138 = vpop.f32.mrb[0].mxu0
    %v2139 = vadd.f32 %v2091, %v2138
    %v2140 = vpop.f32.mrb[0].mxu0
    %2141 = vmatprep.mubr.bf16.mxu0 %v631
    %2142 = vmatmul.mubr.bf16.gmra.mrb[0].mxu0 %v630
    %v2143 = vpop.f32.mrb[0].mxu0
    %v2144 = vadd.f32 %v2091, %v2143
    %v2145 = vpop.f32.mrb[0].mxu0
    %v2146 = vpop.f32.mrb[0].mxu0
    %v2147 = vadd.f32 %v2091, %v2146
    %v2148 = vpop.f32.mrb[0].mxu0
    %2149 = vmatprep.mubr.bf16.mxu0 %v633
    %2150 = vmatmul.mubr.bf16.gmra.mrb[0].mxu0 %v632
    %v2151 = vpop.f32.mrb[0].mxu0
    %v2152 = vadd.f32 %v2091, %v2151
    %v2153 = vpop.f32.mrb[0].mxu0
    %v2154 = vpop.f32.mrb[0].mxu0
    %v2155 = vadd.f32 %v2091, %v2154
    %v2156 = vpop.f32.mrb[0].mxu0
    %2157 = vmatprep.mubr.bf16.mxu0 %v635
    %2158 = vmatmul.mubr.bf16.gmra.mrb[0].mxu0 %v634
    %v2159 = vpop.f32.mrb[0].mxu0
    %v2160 = vadd.f32 %v2091, %v2159
    %v2161 = vpop.f32.mrb[0].mxu0
    %v2162 = vpop.f32.mrb[0].mxu0
    %v2163 = vadd.f32 %v2091, %v2162
    %v2164 = vpop.f32.mrb[0].mxu0
    %2165 = vmatprep.mubr.bf16.mxu0 %v637
    %2166 = vmatmul.mubr.bf16.gmra.mrb[0].mxu0 %v636
    %v2167 = vpop.f32.mrb[0].mxu0
    %v2168 = vadd.f32 %v2091, %v2167
    %v2169 = vpop.f32.mrb[0].mxu0
    %v2170 = vpop.f32.mrb[0].mxu0
    %v2171 = vadd.f32 %v2091, %v2170
    %v2172 = vpop.f32.mrb[0].mxu0
    %2173 = vmatprep.mubr.bf16.mxu0 %v639
    %2174 = vmatmul.mubr.bf16.gmra.mrb[0].mxu0 %v638
    %v2175 = vpop.f32.mrb[0].mxu0
    %v2176 = vadd.f32 %v2091, %v2175
    %v2177 = vpop.f32.mrb[0].mxu0
    %v2178 = vpop.f32.mrb[0].mxu0
    %v2179 = vadd.f32 %v2091, %v2178
    %v2180 = vpop.f32.mrb[0].mxu0
    %2181 = vmatprep.mubr.bf16.mxu0 %v641
    %2182 = vmatmul.mubr.bf16.gmra.mrb[0].mxu0 %v640
    %v2183 = vpop.f32.mrb[0].mxu0
    %v2184 = vadd.f32 %v2091, %v2183
    %v2185 = vpop.f32.mrb[0].mxu0
    %v2186 = vpop.f32.mrb[0].mxu0
    %v2187 = vadd.f32 %v2091, %v2186
    %v2188 = vpop.f32.mrb[0].mxu0
    %2189 = vmatprep.mubr.bf16.mxu0 %v643
    %2190 = vmatmul.mubr.bf16.gmra.mrb[0].mxu0 %v642
    %v2191 = vpop.f32.mrb[0].mxu0
    %v2192 = vadd.f32 %v2091, %v2191
    %v2193 = vpop.f32.mrb[0].mxu0
    %v2194 = vpop.f32.mrb[0].mxu0
    %v2195 = vadd.f32 %v2091, %v2194
    %v2196 = vpop.f32.mrb[0].mxu0
    %2197 = vmatprep.mubr.bf16.mxu0 %v645
    %2198 = vmatmul.mubr.bf16.gmra.mrb[0].mxu0 %v644
    %v2199 = vpop.f32.mrb[0].mxu0
    %v2200 = vadd.f32 %v2091, %v2199
    %v2201 = vpop.f32.mrb[0].mxu0
    %v2202 = vpop.f32.mrb[0].mxu0
    %v2203 = vadd.f32 %v2091, %v2202
    %v2204 = vpop.f32.mrb[0].mxu0
    %2205 = vmatprep.mubr.bf16.mxu0 %v647
    %2206 = vmatmul.mubr.bf16.gmra.mrb[0].mxu0 %v646
    %v2207 = vpop.f32.mrb[0].mxu0
    %v2208 = vadd.f32 %v2091, %v2207
    %v2209 = vpop.f32.mrb[0].mxu0
    %v2210 = vpop.f32.mrb[0].mxu0
    %v2211 = vadd.f32 %v2091, %v2210
    %v2212 = vpop.f32.mrb[0].mxu0
    %2213 = vmatprep.mubr.bf16.mxu0 %v649
    %2214 = vmatmul.mubr.bf16.gmra.mrb[0].mxu0 %v648
    %v2215 = vpop.f32.mrb[0].mxu0
    %v2216 = vadd.f32 %v2091, %v2215
    %v2217 = vpop.f32.mrb[0].mxu0
    %v2218 = vpop.f32.mrb[0].mxu0
    %v2219 = vadd.f32 %v2091, %v2218
    %v2220 = vpop.f32.mrb[0].mxu0
    %2221 = vmatprep.mubr.bf16.mxu0 %v651
    %2222 = vmatmul.mubr.bf16.gmra.mrb[0].mxu0 %v650
    %v2223 = vpop.f32.mrb[0].mxu0
    %v2224 = vadd.f32 %v2091, %v2223
    %v2225 = vpop.f32.mrb[0].mxu0
    %v2226 = vpop.f32.mrb[0].mxu0
    %v2227 = vadd.f32 %v2091, %v2226
    %v2228 = vpop.f32.mrb[0].mxu0
    %2229 = vmatprep.mubr.bf16.mxu0 %v653
    %2230 = vmatmul.mubr.bf16.gmra.mrb[0].mxu0 %v652
    %v2231 = vpop.f32.mrb[0].mxu0
    %v2232 = vadd.f32 %v2091, %v2231
    %v2233 = vpop.f32.mrb[0].mxu0
    %v2234 = vpop.f32.mrb[0].mxu0
    %v2235 = vadd.f32 %v2091, %v2234
    %v2236 = vpop.f32.mrb[0].mxu0
    %2237 = vmatprep.mubr.bf16.mxu0 %v655
    %2238 = vmatmul.mubr.bf16.gmra.mrb[0].mxu0 %v654
    %v2239 = vpop.f32.mrb[0].mxu0
    %v2240 = vadd.f32 %v2091, %v2239
    %v2241 = vpop.f32.mrb[0].mxu0
    %v2242 = vpop.f32.mrb[0].mxu0
    %v2243 = vadd.f32 %v2091, %v2242
    %v2244 = vpop.f32.mrb[0].mxu0
    %2245 = vmatprep.mubr.bf16.mxu0 %v657
    %2246 = vmatmul.mubr.bf16.gmra.mrb[0].mxu0 %v656
    %v2247 = vpop.f32.mrb[0].mxu0
    %v2248 = vadd.f32 %v2091, %v2247
    %v2249 = vpop.f32.mrb[0].mxu0
    %v2250 = vpop.f32.mrb[0].mxu0
    %v2251 = vadd.f32 %v2091, %v2250
    %v2252 = vpop.f32.mrb[0].mxu0
    %2253 = vdwg.mxu0
    %2254 = vst [vmem:[#allocation14] sm:$0xff] %v2128
    %2255 = vst [vmem:[#allocation14 + $0x8] sm:$0xff] %v2131
    %2256 = vst [vmem:[#allocation14 + $0x10] sm:$0xff] %v2136
    %2257 = vst [vmem:[#allocation14 + $0x18] sm:$0xff] %v2139
    %2258 = vst [vmem:[#allocation14 + $0x20] sm:$0xff] %v2144
    %2259 = vst [vmem:[#allocation14 + $0x28] sm:$0xff] %v2147
    %2260 = vst [vmem:[#allocation14 + $0x30] sm:$0xff] %v2152
    %2261 = vst [vmem:[#allocation14 + $0x38] sm:$0xff] %v2155
    %2262 = vst [vmem:[#allocation14 + $0x40] sm:$0xff] %v2160
    %2263 = vst [vmem:[#allocation14 + $0x48] sm:$0xff] %v2163
    %2264 = vst [vmem:[#allocation14 + $0x50] sm:$0xff] %v2168
    %2265 = vst [vmem:[#allocation14 + $0x58] sm:$0xff] %v2171
    %2266 = vst [vmem:[#allocation14 + $0x60] sm:$0xff] %v2176
    %2267 = vst [vmem:[#allocation14 + $0x68] sm:$0xff] %v2179
    %2268 = vst [vmem:[#allocation14 + $0x70] sm:$0xff] %v2184
    %2269 = vst [vmem:[#allocation14 + $0x78] sm:$0xff] %v2187
    %2270 = vst [vmem:[#allocation14 + $0x80] sm:$0xff] %v2192
    %2271 = vst [vmem:[#allocation14 + $0x88] sm:$0xff] %v2195
    %2272 = vst [vmem:[#allocation14 + $0x90] sm:$0xff] %v2200
    %2273 = vst [vmem:[#allocation14 + $0x98] sm:$0xff] %v2203
    %2274 = vst [vmem:[#allocation14 + $0xa0] sm:$0xff] %v2208
    %2275 = vst [vmem:[#allocation14 + $0xa8] sm:$0xff] %v2211
    %2276 = vst [vmem:[#allocation14 + $0xb0] sm:$0xff] %v2216
    %2277 = vst [vmem:[#allocation14 + $0xb8] sm:$0xff] %v2219
    %2278 = vst [vmem:[#allocation14 + $0xc0] sm:$0xff] %v2224
    %2279 = vst [vmem:[#allocation14 + $0xc8] sm:$0xff] %v2227
    %2280 = vst [vmem:[#allocation14 + $0xd0] sm:$0xff] %v2232
    %2281 = vst [vmem:[#allocation14 + $0xd8] sm:$0xff] %v2235
    %2282 = vst [vmem:[#allocation14 + $0xe0] sm:$0xff] %v2240
    %2283 = vst [vmem:[#allocation14 + $0xe8] sm:$0xff] %v2243
    %2284 = vst [vmem:[#allocation14 + $0xf0] sm:$0xff] %v2248
    %2285 = vst [vmem:[#allocation14 + $0xf8] sm:$0xff] %v2251
    // Predicated region
    $region66: #{tpu_custom_call.1} parent=1 // pred_check
      _
    $region67: #{tpu_custom_call.1} parent=1 // pred_check_branch
      %2287 = sbr.rel (0) target = $region69
    $region68: #{tpu_custom_call.1} parent=1 // pred_region
      %s2289 = ssub.s32 4096, 4096
      %2290 = vsyncadd [#allocation4], %s2289
      %s2291 = sshll.u32 [#allocation13], 4
      %s2292 = int_to_ptr.vmem [resolvable:$true] %s2291
      %2297 = dma.vmem_to_hbm [thread:$0]  %s2292, 4096, %s10, [#allocation4], 128, 128, 8
    $region69: #{tpu_custom_call.1} parent=1 // pred_fallthru
      _
    // Predicated region
    $region70: #{tpu_custom_call.1} parent=1 // pred_check
      _
    $region71: #{tpu_custom_call.1} parent=1 // pred_check_branch
      %2299 = sbr.rel (0) target = $region73
    $region72: #{tpu_custom_call.1} parent=1 // pred_region
      %s2301 = ssub.s32 4096, 4096
      %2302 = vsyncadd [#allocation15], %s2301
      %s2303 = sshll.u32 [#allocation14], 4
      %s2304 = int_to_ptr.vmem [resolvable:$true] %s2303
      %2309 = dma.vmem_to_hbm [thread:$0]  %s2304, 4096, %s11, [#allocation15], 128, 128, 8
    $region73: #{tpu_custom_call.1} parent=1 // pred_fallthru
      _
    // Predicated region
    $region74: #{tpu_custom_call.1} parent=1 // pred_check
      _
    $region75: #{tpu_custom_call.1} parent=1 // pred_check_branch
      %2311 = sbr.rel (0) target = $region77
    $region76: #{tpu_custom_call.1} parent=1 // pred_region
      %2312 = dma.done [#allocation4], 4096
    $region77: #{tpu_custom_call.1} parent=1 // pred_fallthru
      _
    // Predicated region
    $region78: #{tpu_custom_call.1} parent=1 // pred_check
      _
    $region79: #{tpu_custom_call.1} parent=1 // pred_check_branch
      %2314 = sbr.rel (0) target = $region81
    $region80: #{tpu_custom_call.1} parent=1 // pred_region
      %2315 = dma.done [#allocation15], 4096
    $region81: #{tpu_custom_call.1} parent=1 // pred_fallthru
      _
    %2316 = vsyncpa [#allocation3], 1
    %2317 = vsyncpa [#allocation6], 1
    %2318 = vsyncpa [#allocation9], 1
    %2319 = vsyncpa [#allocation12], 1
    %2320 = vsyncpa [#allocation4], 1
    %2321 = vsyncpa [#allocation15], 1

</llo_original>
